<compile_context>
chip_gen: v5e
topology: v5e:2x2
jax: 0.10.0
libtpu: 0.0.40
codegen_flags: <defaults>
</compile_context>

<pallas_src>
from functools import partial

import jax
import jax.numpy as jnp
from jax.experimental import pallas as pl
from jax.experimental.pallas import tpu as pltpu


def _erf(x):
    # Abramowitz & Stegun 7.1.26 rational approximation, |err| < 1.5e-7.
    # Keeps exact (erf-based) GELU lowerable with only exp/mul/add.
    a1, a2, a3, a4, a5 = 0.254829592, -0.284496736, 1.421413741, -1.453152027, 1.061405429
    p = 0.3275911
    sign = jnp.where(x >= 0.0, 1.0, -1.0)
    ax = jnp.abs(x)
    t = 1.0 / (1.0 + p * ax)
    poly = ((((a5 * t + a4) * t + a3) * t + a2) * t + a1) * t
    return sign * (1.0 - poly * jnp.exp(-ax * ax))


def _gelu_exact(x):
    return 0.5 * x * (1.0 + _erf(x * 0.7071067811865476))


def _layernorm(x, g, b, eps=1e-5):
    # torch.nn.LayerNorm: biased variance over last dim, eps=1e-5, f32 math.
    mu = jnp.mean(x, axis=-1, keepdims=True)
    xc = x - mu
    var = jnp.mean(xc * xc, axis=-1, keepdims=True)
    return xc * jax.lax.rsqrt(var + eps) * g + b


def block_kernel(x_ref, g1_ref, b1_ref, wqkv_ref, wf_ref, bf_ref,
                 g2_ref, b2_ref, w1_ref, bfc1_ref, w2_ref, bfc2_ref,
                 o_ref, ctx_ref, *, num_heads, scale, mlp_chunk):
    Bt, N, C = x_ref.shape
    M = Bt * N
    dh = C // num_heads
    hidden = w1_ref.shape[1]

    # Fused (Bt*N, C) activation slab for all linears / layernorms.
    x = x_ref[...].astype(jnp.float32).reshape(M, C)

    # ---- norm1 ----
    h = _layernorm(x, g1_ref[...], b1_ref[...])

    # ---- attention ----
    # qkv Linear (qkv_bias=False): one (M, C) x (C, 3C) MXU matmul, bf16 in / f32 acc.
    qkv = jnp.dot(h.astype(jnp.bfloat16), wqkv_ref[...],
                  preferred_element_type=jnp.float32)                     # (M, 3C) f32

    # Fold the softmax scale into q (touches M*C elems instead of the N*N scores).
    q = (qkv[:, 0:C] * scale).reshape(Bt, N, C).astype(jnp.bfloat16)
    k = qkv[:, C:2 * C].reshape(Bt, N, C).astype(jnp.bfloat16)
    v = qkv[:, 2 * C:3 * C].reshape(Bt, N, C).astype(jnp.bfloat16)

    # Per-head scores/softmax/context (batched over Bt via 3-D dot_generals, no
    # explicit k transpose).  Each head's context is stored into the bf16 VMEM
    # scratch at its static lane slice; the output projection is then a single
    # full-K (M, C) @ (C, C) matmul against the un-split feature weight.
    for hh in range(num_heads):                                           # static, unrolled
        sl = slice(hh * dh, (hh + 1) * dh)
        qh, kh, vh = q[:, :, sl], k[:, :, sl], v[:, :, sl]                # (Bt, N, dh)
        s = jnp.einsum('bqd,bkd->bqk', qh, kh,
                       preferred_element_type=jnp.float32)                # (Bt, N, N)
        s = s - jnp.max(s, axis=-1, keepdims=True)
        e = jnp.exp(s)
        p = e * pl.reciprocal(jnp.sum(e, axis=-1, keepdims=True), approx=True)
        ctx = jnp.einsum('bqk,bkd->bqd', p.astype(jnp.bfloat16), vh,
                         preferred_element_type=jnp.float32)              # (Bt, N, dh)
        ctx_ref[:, :, sl] = ctx.astype(jnp.bfloat16)

    attn = jnp.dot(ctx_ref[...].reshape(M, C), wf_ref[...],
                   preferred_element_type=jnp.float32)                    # (M, C), K = C

    # feature bias (attenDrop / featureDrop are identity at p=0.0),
    # then x = x + drop_path(x) with Identity drop_path -> 2*x.
    y = 2.0 * (attn + bf_ref[...].astype(jnp.float32))

    # ---- norm2 + MLP (hidden-dim tiled) ----
    h2 = _layernorm(y, g2_ref[...], b2_ref[...]).astype(jnp.bfloat16)
    f2 = jnp.zeros((M, C), jnp.float32)
    for j in range(hidden // mlp_chunk):                                  # static, unrolled
        cs = slice(j * mlp_chunk, (j + 1) * mlp_chunk)
        f1 = jnp.dot(h2, w1_ref[:, cs],
                     preferred_element_type=jnp.float32) + bfc1_ref[:, cs].astype(jnp.float32)
        f1 = _gelu_exact(f1)
        f2 = f2 + jnp.dot(f1.astype(jnp.bfloat16), w2_ref[cs, :],
                          preferred_element_type=jnp.float32)
    f2 = f2 + bfc2_ref[...].astype(jnp.float32)

    # x = x + drop_path(x) -> 2*x
    o_ref[...] = (2.0 * f2).reshape(Bt, N, C).astype(o_ref.dtype)


def _chip_limits():
    """Per-generation (vmem_limit_cap_bytes, max fused rows)."""
    try:
        cap = int(pltpu.get_tpu_info().vmem_capacity_bytes)
    except Exception:
        cap = 64 * 1024 * 1024                      # conservative fallback
    if cap <= 64 * 1024 * 1024:                     # v7x: 64 MiB per TensorCore
        return 56 * 1024 * 1024, 512
    return 100 * 1024 * 1024, 1024                  # v5e / v6e: 128 MiB


def _choose_block_batch(B, N, *, target_rows=256, max_rows=1024, min_grid=2):
    """Divisor Bt of B with Bt*N <= max_rows; prefer >=min_grid grid steps
    (megacore sharding) and the smallest Bt reaching target_rows."""
    divs = [d for d in range(1, B + 1) if B % d == 0]
    cands = [d for d in divs if d * N <= max_rows] or [1]
    grid_ok = [d for d in cands if B // d >= min_grid]
    pool = grid_ok if grid_ok else cands
    meet = [d for d in pool if d * N >= target_rows]
    return min(meet) if meet else max(pool)


def _mlp_chunk(hidden, max_chunk=1024):
    """Largest divisor of hidden <= max_chunk, preferring lane-aligned (x128) chunks."""
    if hidden <= max_chunk:
        return hidden
    for c in range(max_chunk - max_chunk % 128, 0, -128):
        if c > 0 and hidden % c == 0:
            return c
    for c in range(max_chunk, 0, -1):
        if hidden % c == 0:
            return c
    return hidden


def _const_spec(shape):
    return pl.BlockSpec(shape, lambda *_: (0,) * len(shape))


def prepare_block_params(g1, b1, wqkv, wf, bf, g2, b2, w1, bfc1, w2, bfc2):
    """Hoisted, once-per-weight-set preprocessing: cast the large matmul weights
    to bf16 (MXU operands + halved resident VMEM).  LN params and biases stay
    f32 (tiny, added on f32 accumulators)."""
    return (g1, b1, wqkv.astype(jnp.bfloat16), wf.astype(jnp.bfloat16), bf,
            g2, b2, w1.astype(jnp.bfloat16), bfc1, w2.astype(jnp.bfloat16), bfc2)


def vit_block(x, params, *, num_heads, block_batch=None):
    g1, b1, wqkv_b, wf_b, bf, g2, b2, w1_b, bfc1, w2_b, bfc2 = params
    B, N, C = x.shape
    hidden = w1_b.shape[1]
    assert C % num_heads == 0
    scale = float((C / num_heads) ** -0.5)          # qk_scale=None -> head_dim**-0.5
    dh = C // num_heads

    vmem_cap, max_rows = _chip_limits()
    Bt = block_batch or _choose_block_batch(B, N, max_rows=max_rows)
    assert B % Bt == 0
    mlp_chunk = _mlp_chunk(hidden)
    assert hidden % mlp_chunk == 0

    # VMEM budget: resident (possibly double-buffered) weights + double-buffered
    # x/out tiles + ctx scratch + headroom for f32 intermediates; clamp to the
    # per-generation cap so we never request more than physically exists.
    w_bytes = sum(int(a.size) * a.dtype.itemsize for a in params)
    io_bytes = 2 * 2 * Bt * N * C * x.dtype.itemsize
    scratch_bytes = Bt * N * C * 2
    act_bytes = 8 * Bt * N * max(3 * C, C + mlp_chunk) * 4
    need = 2 * w_bytes + io_bytes + scratch_bytes + act_bytes
    vmem_limit = int(min(max(need, 32 * 1024 * 1024), vmem_cap))

    # Advisory cost estimate for the whole fused call.
    Mtot = B * N
    flops = (2 * Mtot * C * 3 * C                    # qkv
             + 4 * B * num_heads * N * N * dh        # scores + context
             + 2 * Mtot * C * C                      # output projection
             + 4 * Mtot * C * hidden)                # fc1 + fc2
    transcendentals = B * num_heads * N * N + 2 * Mtot * hidden
    bytes_accessed = 2 * Mtot * C * x.dtype.itemsize + w_bytes
    cost = pl.CostEstimate(flops=int(flops), transcendentals=int(transcendentals),
                           bytes_accessed=int(bytes_accessed))

    kernel = partial(block_kernel, num_heads=num_heads, scale=scale, mlp_chunk=mlp_chunk)

    return pl.pallas_call(
        kernel,
        out_shape=jax.ShapeDtypeStruct((B, N, C), x.dtype),
        grid=(B // Bt,),
        in_specs=[
            pl.BlockSpec((Bt, N, C), lambda b: (b, 0, 0)),   # x: Bt batch rows per grid step
            _const_spec((1, C)), _const_spec((1, C)),        # norm1 gamma, beta
            _const_spec((C, 3 * C)),                         # qkv weight (bf16)
            _const_spec((C, C)),                             # feature weight (bf16, un-split)
            _const_spec((1, C)),                             # feature bias
            _const_spec((1, C)), _const_spec((1, C)),        # norm2 gamma, beta
            _const_spec((C, hidden)), _const_spec((1, hidden)),   # fc1 weight (bf16), bias
            _const_spec((hidden, C)), _const_spec((1, C)),        # fc2 weight (bf16), bias
        ],
        out_specs=pl.BlockSpec((Bt, N, C), lambda b: (b, 0, 0)),
        scratch_shapes=[pltpu.VMEM((Bt, N, C), jnp.bfloat16)],    # per-head ctx assembly
        compiler_params=pltpu.CompilerParams(
            dimension_semantics=("parallel",),               # megacore sharding on v7x
            vmem_limit_bytes=vmem_limit),
        cost_estimate=cost,
    )(x, g1, b1, wqkv_b, wf_b, bf, g2, b2, w1_b, bfc1, w2_b, bfc2)


def vit_block_reference(x, g1, b1, wqkv, wf, bf, g2, b2, w1, bfc1, w2, bfc2, *, num_heads):
    """Pure-JAX f32 reference mirroring the PyTorch module exactly."""
    B, N, C = x.shape
    dh = C // num_heads
    scale = (C / num_heads) ** -0.5

    def ln(t, g, b, eps=1e-5):
        mu = t.mean(-1, keepdims=True)
        var = ((t - mu) ** 2).mean(-1, keepdims=True)
        return (t - mu) / jnp.sqrt(var + eps) * g + b

    h = ln(x, g1, b1)
    qkv = h @ wqkv
    qkv = qkv.reshape(B, N, 3, num_heads, dh).transpose(2, 0, 3, 1, 4)
    q, k, v = qkv[0], qkv[1], qkv[2]                          # (B, H, N, dh)
    att = (q @ jnp.swapaxes(k, -2, -1)) * scale
    att = jax.nn.softmax(att, axis=-1)
    ctx = (att @ v).transpose(0, 2, 1, 3).reshape(B, N, C)
    a = ctx @ wf + bf
    y = a + a                                                  # x + drop_path(x) == 2x
    h2 = ln(y, g2, b2)
    f1 = jax.nn.gelu(h2 @ w1 + bfc1, approximate=False)
    f2 = f1 @ w2 + bfc2
    return f2 + f2                                             # x + drop_path(x) == 2x


if __name__ == "__main__":
    B, N, C = 2, 8, 32
    num_heads = 4
    mlp_ratio = 4.0
    hidden = int(C * mlp_ratio)                                # 128

    key = jax.random.PRNGKey(0)
    ks = jax.random.split(key, 8)

    x = jax.random.normal(ks[0], (B, N, C), jnp.float32)

    # LayerNorm params (torch default init: gamma=1, beta=0)
    g1 = jnp.ones((1, C), jnp.float32)
    b1 = jnp.zeros((1, C), jnp.float32)
    g2 = jnp.ones((1, C), jnp.float32)
    b2 = jnp.zeros((1, C), jnp.float32)

    # Linear params (deterministic synthetic init), stored as (in, out)
    wqkv = 0.02 * jax.random.normal(ks[1], (C, 3 * C), jnp.float32)       # qkv (no bias)
    wf   = 0.02 * jax.random.normal(ks[2], (C, C), jnp.float32)           # feature weight
    bf   = 0.02 * jax.random.normal(ks[3], (1, C), jnp.float32)           # feature bias
    w1   = 0.02 * jax.random.normal(ks[4], (C, hidden), jnp.float32)      # mlp fc1 weight
    bfc1 = 0.02 * jax.random.normal(ks[5], (1, hidden), jnp.float32)      # mlp fc1 bias
    w2   = 0.02 * jax.random.normal(ks[6], (hidden, C), jnp.float32)      # mlp fc2 weight
    bfc2 = 0.02 * jax.random.normal(ks[7], (1, C), jnp.float32)           # mlp fc2 bias

    # Once-per-weight-set bf16 cast (hoisted out of the call path).
    params = prepare_block_params(g1, b1, wqkv, wf, bf, g2, b2, w1, bfc1, w2, bfc2)

    out = vit_block(x, params, num_heads=num_heads)
    jax.block_until_ready(out)
    assert out.shape == (B, N, C)

    # Loose sanity check vs. the f32 reference (kernel uses bf16 MXU operands and
    # approximate reciprocal/erf, so tolerances are generous).
    ref = vit_block_reference(x, g1, b1, wqkv, wf, bf, g2, b2, w1, bfc1, w2, bfc2,
                              num_heads=num_heads)
    assert jnp.allclose(out, ref, atol=1e-2, rtol=1e-1), (
        f"max abs diff {jnp.max(jnp.abs(out - ref))}")

    print("KERNEL_OK")
</pallas_src>

<mosaic_0001>
module attributes {stable_mosaic.version = 11 : i64} {
  func.func @block_kernel(%arg0: i32, %arg1: memref<1x8x32xf32, #tpu.memory_space<vmem>>, %arg2: memref<1x32xf32, #tpu.memory_space<vmem>>, %arg3: memref<1x32xf32, #tpu.memory_space<vmem>>, %arg4: memref<32x96xbf16, #tpu.memory_space<vmem>>, %arg5: memref<32x32xbf16, #tpu.memory_space<vmem>>, %arg6: memref<1x32xf32, #tpu.memory_space<vmem>>, %arg7: memref<1x32xf32, #tpu.memory_space<vmem>>, %arg8: memref<1x32xf32, #tpu.memory_space<vmem>>, %arg9: memref<32x128xbf16, #tpu.memory_space<vmem>>, %arg10: memref<1x128xf32, #tpu.memory_space<vmem>>, %arg11: memref<128x32xbf16, #tpu.memory_space<vmem>>, %arg12: memref<1x32xf32, #tpu.memory_space<vmem>>, %arg13: memref<1x8x32xf32, #tpu.memory_space<vmem>>, %arg14: memref<1x8x32xbf16, #tpu.memory_space<vmem>>) attributes {dimension_semantics = [#tpu.dimension_semantics<parallel>], iteration_bounds = array<i64: 2>, scalar_prefetch = 0 : i64, scratch_operands = 1 : i64, tpu.core_type = #tpu.core_type<tc>, window_params = [{transform_indices = @transform_0, window_bounds = array<i64: 1, 8, 32>}, {pipeline_mode = #tpu.pipeline_mode<synchronous>, transform_indices = @transform_1, window_bounds = array<i64: 1, 32>}, {pipeline_mode = #tpu.pipeline_mode<synchronous>, transform_indices = @transform_2, window_bounds = array<i64: 1, 32>}, {pipeline_mode = #tpu.pipeline_mode<synchronous>, transform_indices = @transform_3, window_bounds = array<i64: 32, 96>}, {pipeline_mode = #tpu.pipeline_mode<synchronous>, transform_indices = @transform_4, window_bounds = array<i64: 32, 32>}, {pipeline_mode = #tpu.pipeline_mode<synchronous>, transform_indices = @transform_5, window_bounds = array<i64: 1, 32>}, {pipeline_mode = #tpu.pipeline_mode<synchronous>, transform_indices = @transform_6, window_bounds = array<i64: 1, 32>}, {pipeline_mode = #tpu.pipeline_mode<synchronous>, transform_indices = @transform_7, window_bounds = array<i64: 1, 32>}, {pipeline_mode = #tpu.pipeline_mode<synchronous>, transform_indices = @transform_8, window_bounds = array<i64: 32, 128>}, {pipeline_mode = #tpu.pipeline_mode<synchronous>, transform_indices = @transform_9, window_bounds = array<i64: 1, 128>}, {pipeline_mode = #tpu.pipeline_mode<synchronous>, transform_indices = @transform_10, window_bounds = array<i64: 128, 32>}, {pipeline_mode = #tpu.pipeline_mode<synchronous>, transform_indices = @transform_11, window_bounds = array<i64: 1, 32>}, {transform_indices = @transform_12, window_bounds = array<i64: 1, 8, 32>}]} {
    %c0 = arith.constant 0 : index
    %c0_0 = arith.constant 0 : index
    %c0_1 = arith.constant 0 : index
    %0 = vector.load %arg1[%c0, %c0_0, %c0_1] : memref<1x8x32xf32, #tpu.memory_space<vmem>>, vector<1x8x32xf32>
    %1 = vector.shape_cast %0 : vector<1x8x32xf32> to vector<8x32xf32>
    %c0_2 = arith.constant 0 : index
    %c0_3 = arith.constant 0 : index
    %2 = vector.load %arg2[%c0_2, %c0_3] : memref<1x32xf32, #tpu.memory_space<vmem>>, vector<1x32xf32>
    %c0_4 = arith.constant 0 : index
    %c0_5 = arith.constant 0 : index
    %3 = vector.load %arg3[%c0_4, %c0_5] : memref<1x32xf32, #tpu.memory_space<vmem>>, vector<1x32xf32>
    %cst = arith.constant dense<0.000000e+00> : vector<8xf32>
    %4 = vector.multi_reduction <add>, %1, %cst [1] : vector<8x32xf32> to vector<8xf32>
    %5 = vector.shape_cast %4 : vector<8xf32> to vector<8x1xf32>
    %cst_6 = arith.constant 3.200000e+01 : f32
    %6 = vector.broadcast %cst_6 : f32 to vector<8x1xf32>
    %7 = arith.divf %5, %6 : vector<8x1xf32>
    %8 = vector.broadcast %7 : vector<8x1xf32> to vector<8x32xf32>
    %9 = arith.subf %1, %8 : vector<8x32xf32>
    %10 = arith.mulf %9, %9 : vector<8x32xf32>
    %cst_7 = arith.constant dense<0.000000e+00> : vector<8xf32>
    %11 = vector.multi_reduction <add>, %10, %cst_7 [1] : vector<8x32xf32> to vector<8xf32>
    %12 = vector.shape_cast %11 : vector<8xf32> to vector<8x1xf32>
    %cst_8 = arith.constant 3.200000e+01 : f32
    %13 = vector.broadcast %cst_8 : f32 to vector<8x1xf32>
    %14 = arith.divf %12, %13 : vector<8x1xf32>
    %cst_9 = arith.constant 9.99999974E-6 : f32
    %15 = vector.broadcast %cst_9 : f32 to vector<8x1xf32>
    %16 = arith.addf %14, %15 : vector<8x1xf32>
    %17 = math.rsqrt %16 : vector<8x1xf32>
    %18 = vector.broadcast %17 : vector<8x1xf32> to vector<8x32xf32>
    %19 = arith.mulf %9, %18 : vector<8x32xf32>
    %20 = vector.broadcast %2 : vector<1x32xf32> to vector<8x32xf32>
    %21 = arith.mulf %19, %20 : vector<8x32xf32>
    %22 = vector.broadcast %3 : vector<1x32xf32> to vector<8x32xf32>
    %23 = arith.addf %21, %22 : vector<8x32xf32>
    %24 = arith.truncf %23 : vector<8x32xf32> to vector<8x32xbf16>
    %c0_10 = arith.constant 0 : index
    %c0_11 = arith.constant 0 : index
    %25 = vector.load %arg4[%c0_10, %c0_11] : memref<32x96xbf16, #tpu.memory_space<vmem>>, vector<32x96xbf16>
    %cst_12 = arith.constant dense<0.000000e+00> : vector<8x96xf32>
    %26 = tpu.matmul %24, %25, %cst_12 {dimension_numbers = #tpu.dot_dimension_numbers<[1], [0], [0], [1], [0, 0, 1, 1], [], []>} : vector<8x32xbf16>, vector<32x96xbf16>, vector<8x96xf32> -> vector<8x96xf32>
    %27 = vector.extract_strided_slice %26 {offsets = [0, 0], sizes = [8, 32], strides = [1, 1]} : vector<8x96xf32> to vector<8x32xf32>
    %cst_13 = arith.constant 0.353553385 : f32
    %28 = vector.broadcast %cst_13 : f32 to vector<8x32xf32>
    %29 = arith.mulf %27, %28 : vector<8x32xf32>
    %30 = vector.shape_cast %29 : vector<8x32xf32> to vector<1x8x32xf32>
    %31 = arith.truncf %30 : vector<1x8x32xf32> to vector<1x8x32xbf16>
    %32 = vector.extract_strided_slice %26 {offsets = [0, 32], sizes = [8, 32], strides = [1, 1]} : vector<8x96xf32> to vector<8x32xf32>
    %33 = vector.shape_cast %32 : vector<8x32xf32> to vector<1x8x32xf32>
    %34 = arith.truncf %33 : vector<1x8x32xf32> to vector<1x8x32xbf16>
    %35 = vector.extract_strided_slice %26 {offsets = [0, 64], sizes = [8, 32], strides = [1, 1]} : vector<8x96xf32> to vector<8x32xf32>
    %36 = vector.shape_cast %35 : vector<8x32xf32> to vector<1x8x32xf32>
    %37 = arith.truncf %36 : vector<1x8x32xf32> to vector<1x8x32xbf16>
    %38 = vector.extract_strided_slice %31 {offsets = [0, 0, 0], sizes = [1, 8, 8], strides = [1, 1, 1]} : vector<1x8x32xbf16> to vector<1x8x8xbf16>
    %39 = vector.extract_strided_slice %34 {offsets = [0, 0, 0], sizes = [1, 8, 8], strides = [1, 1, 1]} : vector<1x8x32xbf16> to vector<1x8x8xbf16>
    %40 = vector.extract_strided_slice %37 {offsets = [0, 0, 0], sizes = [1, 8, 8], strides = [1, 1, 1]} : vector<1x8x32xbf16> to vector<1x8x8xbf16>
    "tpu.trace_start"() <{level = 10 : i32, message = "bqd,bkd->bqk"}> : () -> ()
    %cst_14 = arith.constant dense<0.000000e+00> : vector<1x8x8xf32>
    %41 = tpu.matmul %38, %39, %cst_14 {dimension_numbers = #tpu.dot_dimension_numbers<[2], [2], [1], [1], [0, 0, 0, 1, 1, 1], [0], [0]>} : vector<1x8x8xbf16>, vector<1x8x8xbf16>, vector<1x8x8xf32> -> vector<1x8x8xf32>
    "tpu.trace_stop"() : () -> ()
    %cst_15 = arith.constant dense<0xFF800000> : vector<1x8xf32>
    %42 = vector.multi_reduction <maximumf>, %41, %cst_15 [2] : vector<1x8x8xf32> to vector<1x8xf32>
    %43 = vector.shape_cast %42 : vector<1x8xf32> to vector<1x8x1xf32>
    %44 = vector.broadcast %43 : vector<1x8x1xf32> to vector<1x8x8xf32>
    %45 = arith.subf %41, %44 : vector<1x8x8xf32>
    %46 = math.exp %45 : vector<1x8x8xf32>
    %cst_16 = arith.constant dense<0.000000e+00> : vector<1x8xf32>
    %47 = vector.multi_reduction <add>, %46, %cst_16 [2] : vector<1x8x8xf32> to vector<1x8xf32>
    %48 = vector.shape_cast %47 : vector<1x8xf32> to vector<1x8x1xf32>
    %49 = tpu.reciprocal %48 {approx = true} : vector<1x8x1xf32> -> vector<1x8x1xf32>
    %50 = vector.broadcast %49 : vector<1x8x1xf32> to vector<1x8x8xf32>
    %51 = arith.mulf %46, %50 : vector<1x8x8xf32>
    %52 = arith.truncf %51 : vector<1x8x8xf32> to vector<1x8x8xbf16>
    "tpu.trace_start"() <{level = 10 : i32, message = "bqk,bkd->bqd"}> : () -> ()
    %cst_17 = arith.constant dense<0.000000e+00> : vector<1x8x8xf32>
    %53 = tpu.matmul %52, %40, %cst_17 {dimension_numbers = #tpu.dot_dimension_numbers<[2], [1], [1], [2], [0, 0, 0, 1, 1, 2], [0], [0]>} : vector<1x8x8xbf16>, vector<1x8x8xbf16>, vector<1x8x8xf32> -> vector<1x8x8xf32>
    "tpu.trace_stop"() : () -> ()
    %54 = arith.truncf %53 : vector<1x8x8xf32> to vector<1x8x8xbf16>
    %c0_18 = arith.constant 0 : index
    %c0_19 = arith.constant 0 : index
    %c0_20 = arith.constant 0 : index
    %55 = vector.load %arg14[%c0_18, %c0_19, %c0_20] : memref<1x8x32xbf16, #tpu.memory_space<vmem>>, vector<1x8x8xbf16>
    tpu.vector_store %arg14[%c0_18, %c0_19, %c0_20], %54 {strides = array<i32>} : memref<1x8x32xbf16, #tpu.memory_space<vmem>>, vector<1x8x8xbf16>,
    %56 = vector.extract_strided_slice %31 {offsets = [0, 0, 8], sizes = [1, 8, 8], strides = [1, 1, 1]} : vector<1x8x32xbf16> to vector<1x8x8xbf16>
    %57 = vector.extract_strided_slice %34 {offsets = [0, 0, 8], sizes = [1, 8, 8], strides = [1, 1, 1]} : vector<1x8x32xbf16> to vector<1x8x8xbf16>
    %58 = vector.extract_strided_slice %37 {offsets = [0, 0, 8], sizes = [1, 8, 8], strides = [1, 1, 1]} : vector<1x8x32xbf16> to vector<1x8x8xbf16>
    "tpu.trace_start"() <{level = 10 : i32, message = "bqd,bkd->bqk"}> : () -> ()
    %cst_21 = arith.constant dense<0.000000e+00> : vector<1x8x8xf32>
    %59 = tpu.matmul %56, %57, %cst_21 {dimension_numbers = #tpu.dot_dimension_numbers<[2], [2], [1], [1], [0, 0, 0, 1, 1, 1], [0], [0]>} : vector<1x8x8xbf16>, vector<1x8x8xbf16>, vector<1x8x8xf32> -> vector<1x8x8xf32>
    "tpu.trace_stop"() : () -> ()
    %cst_22 = arith.constant dense<0xFF800000> : vector<1x8xf32>
    %60 = vector.multi_reduction <maximumf>, %59, %cst_22 [2] : vector<1x8x8xf32> to vector<1x8xf32>
    %61 = vector.shape_cast %60 : vector<1x8xf32> to vector<1x8x1xf32>
    %62 = vector.broadcast %61 : vector<1x8x1xf32> to vector<1x8x8xf32>
    %63 = arith.subf %59, %62 : vector<1x8x8xf32>
    %64 = math.exp %63 : vector<1x8x8xf32>
    %cst_23 = arith.constant dense<0.000000e+00> : vector<1x8xf32>
    %65 = vector.multi_reduction <add>, %64, %cst_23 [2] : vector<1x8x8xf32> to vector<1x8xf32>
    %66 = vector.shape_cast %65 : vector<1x8xf32> to vector<1x8x1xf32>
    %67 = tpu.reciprocal %66 {approx = true} : vector<1x8x1xf32> -> vector<1x8x1xf32>
    %68 = vector.broadcast %67 : vector<1x8x1xf32> to vector<1x8x8xf32>
    %69 = arith.mulf %64, %68 : vector<1x8x8xf32>
    %70 = arith.truncf %69 : vector<1x8x8xf32> to vector<1x8x8xbf16>
    "tpu.trace_start"() <{level = 10 : i32, message = "bqk,bkd->bqd"}> : () -> ()
    %cst_24 = arith.constant dense<0.000000e+00> : vector<1x8x8xf32>
    %71 = tpu.matmul %70, %58, %cst_24 {dimension_numbers = #tpu.dot_dimension_numbers<[2], [1], [1], [2], [0, 0, 0, 1, 1, 2], [0], [0]>} : vector<1x8x8xbf16>, vector<1x8x8xbf16>, vector<1x8x8xf32> -> vector<1x8x8xf32>
    "tpu.trace_stop"() : () -> ()
    %72 = arith.truncf %71 : vector<1x8x8xf32> to vector<1x8x8xbf16>
    %c0_25 = arith.constant 0 : index
    %c0_26 = arith.constant 0 : index
    %c8 = arith.constant 8 : index
    %73 = vector.load %arg14[%c0_25, %c0_26, %c8] : memref<1x8x32xbf16, #tpu.memory_space<vmem>>, vector<1x8x8xbf16>
    tpu.vector_store %arg14[%c0_25, %c0_26, %c8], %72 {strides = array<i32>} : memref<1x8x32xbf16, #tpu.memory_space<vmem>>, vector<1x8x8xbf16>,
    %74 = vector.extract_strided_slice %31 {offsets = [0, 0, 16], sizes = [1, 8, 8], strides = [1, 1, 1]} : vector<1x8x32xbf16> to vector<1x8x8xbf16>
    %75 = vector.extract_strided_slice %34 {offsets = [0, 0, 16], sizes = [1, 8, 8], strides = [1, 1, 1]} : vector<1x8x32xbf16> to vector<1x8x8xbf16>
    %76 = vector.extract_strided_slice %37 {offsets = [0, 0, 16], sizes = [1, 8, 8], strides = [1, 1, 1]} : vector<1x8x32xbf16> to vector<1x8x8xbf16>
    "tpu.trace_start"() <{level = 10 : i32, message = "bqd,bkd->bqk"}> : () -> ()
    %cst_27 = arith.constant dense<0.000000e+00> : vector<1x8x8xf32>
    %77 = tpu.matmul %74, %75, %cst_27 {dimension_numbers = #tpu.dot_dimension_numbers<[2], [2], [1], [1], [0, 0, 0, 1, 1, 1], [0], [0]>} : vector<1x8x8xbf16>, vector<1x8x8xbf16>, vector<1x8x8xf32> -> vector<1x8x8xf32>
    "tpu.trace_stop"() : () -> ()
    %cst_28 = arith.constant dense<0xFF800000> : vector<1x8xf32>
    %78 = vector.multi_reduction <maximumf>, %77, %cst_28 [2] : vector<1x8x8xf32> to vector<1x8xf32>
    %79 = vector.shape_cast %78 : vector<1x8xf32> to vector<1x8x1xf32>
    %80 = vector.broadcast %79 : vector<1x8x1xf32> to vector<1x8x8xf32>
    %81 = arith.subf %77, %80 : vector<1x8x8xf32>
    %82 = math.exp %81 : vector<1x8x8xf32>
    %cst_29 = arith.constant dense<0.000000e+00> : vector<1x8xf32>
    %83 = vector.multi_reduction <add>, %82, %cst_29 [2] : vector<1x8x8xf32> to vector<1x8xf32>
    %84 = vector.shape_cast %83 : vector<1x8xf32> to vector<1x8x1xf32>
    %85 = tpu.reciprocal %84 {approx = true} : vector<1x8x1xf32> -> vector<1x8x1xf32>
    %86 = vector.broadcast %85 : vector<1x8x1xf32> to vector<1x8x8xf32>
    %87 = arith.mulf %82, %86 : vector<1x8x8xf32>
    %88 = arith.truncf %87 : vector<1x8x8xf32> to vector<1x8x8xbf16>
    "tpu.trace_start"() <{level = 10 : i32, message = "bqk,bkd->bqd"}> : () -> ()
    %cst_30 = arith.constant dense<0.000000e+00> : vector<1x8x8xf32>
    %89 = tpu.matmul %88, %76, %cst_30 {dimension_numbers = #tpu.dot_dimension_numbers<[2], [1], [1], [2], [0, 0, 0, 1, 1, 2], [0], [0]>} : vector<1x8x8xbf16>, vector<1x8x8xbf16>, vector<1x8x8xf32> -> vector<1x8x8xf32>
    "tpu.trace_stop"() : () -> ()
    %90 = arith.truncf %89 : vector<1x8x8xf32> to vector<1x8x8xbf16>
    %c0_31 = arith.constant 0 : index
    %c0_32 = arith.constant 0 : index
    %c16 = arith.constant 16 : index
    %91 = vector.load %arg14[%c0_31, %c0_32, %c16] : memref<1x8x32xbf16, #tpu.memory_space<vmem>>, vector<1x8x8xbf16>
    tpu.vector_store %arg14[%c0_31, %c0_32, %c16], %90 {strides = array<i32>} : memref<1x8x32xbf16, #tpu.memory_space<vmem>>, vector<1x8x8xbf16>,
    %92 = vector.extract_strided_slice %31 {offsets = [0, 0, 24], sizes = [1, 8, 8], strides = [1, 1, 1]} : vector<1x8x32xbf16> to vector<1x8x8xbf16>
    %93 = vector.extract_strided_slice %34 {offsets = [0, 0, 24], sizes = [1, 8, 8], strides = [1, 1, 1]} : vector<1x8x32xbf16> to vector<1x8x8xbf16>
    %94 = vector.extract_strided_slice %37 {offsets = [0, 0, 24], sizes = [1, 8, 8], strides = [1, 1, 1]} : vector<1x8x32xbf16> to vector<1x8x8xbf16>
    "tpu.trace_start"() <{level = 10 : i32, message = "bqd,bkd->bqk"}> : () -> ()
    %cst_33 = arith.constant dense<0.000000e+00> : vector<1x8x8xf32>
    %95 = tpu.matmul %92, %93, %cst_33 {dimension_numbers = #tpu.dot_dimension_numbers<[2], [2], [1], [1], [0, 0, 0, 1, 1, 1], [0], [0]>} : vector<1x8x8xbf16>, vector<1x8x8xbf16>, vector<1x8x8xf32> -> vector<1x8x8xf32>
    "tpu.trace_stop"() : () -> ()
    %cst_34 = arith.constant dense<0xFF800000> : vector<1x8xf32>
    %96 = vector.multi_reduction <maximumf>, %95, %cst_34 [2] : vector<1x8x8xf32> to vector<1x8xf32>
    %97 = vector.shape_cast %96 : vector<1x8xf32> to vector<1x8x1xf32>
    %98 = vector.broadcast %97 : vector<1x8x1xf32> to vector<1x8x8xf32>
    %99 = arith.subf %95, %98 : vector<1x8x8xf32>
    %100 = math.exp %99 : vector<1x8x8xf32>
    %cst_35 = arith.constant dense<0.000000e+00> : vector<1x8xf32>
    %101 = vector.multi_reduction <add>, %100, %cst_35 [2] : vector<1x8x8xf32> to vector<1x8xf32>
    %102 = vector.shape_cast %101 : vector<1x8xf32> to vector<1x8x1xf32>
    %103 = tpu.reciprocal %102 {approx = true} : vector<1x8x1xf32> -> vector<1x8x1xf32>
    %104 = vector.broadcast %103 : vector<1x8x1xf32> to vector<1x8x8xf32>
    %105 = arith.mulf %100, %104 : vector<1x8x8xf32>
    %106 = arith.truncf %105 : vector<1x8x8xf32> to vector<1x8x8xbf16>
    "tpu.trace_start"() <{level = 10 : i32, message = "bqk,bkd->bqd"}> : () -> ()
    %cst_36 = arith.constant dense<0.000000e+00> : vector<1x8x8xf32>
    %107 = tpu.matmul %106, %94, %cst_36 {dimension_numbers = #tpu.dot_dimension_numbers<[2], [1], [1], [2], [0, 0, 0, 1, 1, 2], [0], [0]>} : vector<1x8x8xbf16>, vector<1x8x8xbf16>, vector<1x8x8xf32> -> vector<1x8x8xf32>
    "tpu.trace_stop"() : () -> ()
    %108 = arith.truncf %107 : vector<1x8x8xf32> to vector<1x8x8xbf16>
    %c0_37 = arith.constant 0 : index
    %c0_38 = arith.constant 0 : index
    %c24 = arith.constant 24 : index
    %109 = vector.load %arg14[%c0_37, %c0_38, %c24] : memref<1x8x32xbf16, #tpu.memory_space<vmem>>, vector<1x8x8xbf16>
    tpu.vector_store %arg14[%c0_37, %c0_38, %c24], %108 {strides = array<i32>} : memref<1x8x32xbf16, #tpu.memory_space<vmem>>, vector<1x8x8xbf16>,
    %c0_39 = arith.constant 0 : index
    %c0_40 = arith.constant 0 : index
    %c0_41 = arith.constant 0 : index
    %110 = vector.load %arg14[%c0_39, %c0_40, %c0_41] : memref<1x8x32xbf16, #tpu.memory_space<vmem>>, vector<1x8x32xbf16>
    %111 = vector.shape_cast %110 : vector<1x8x32xbf16> to vector<8x32xbf16>
    %c0_42 = arith.constant 0 : index
    %c0_43 = arith.constant 0 : index
    %112 = vector.load %arg5[%c0_42, %c0_43] : memref<32x32xbf16, #tpu.memory_space<vmem>>, vector<32x32xbf16>
    %cst_44 = arith.constant dense<0.000000e+00> : vector<8x32xf32>
    %113 = tpu.matmul %111, %112, %cst_44 {dimension_numbers = #tpu.dot_dimension_numbers<[1], [0], [0], [1], [0, 0, 1, 1], [], []>} : vector<8x32xbf16>, vector<32x32xbf16>, vector<8x32xf32> -> vector<8x32xf32>
    %c0_45 = arith.constant 0 : index
    %c0_46 = arith.constant 0 : index
    %114 = vector.load %arg6[%c0_45, %c0_46] : memref<1x32xf32, #tpu.memory_space<vmem>>, vector<1x32xf32>
    %115 = vector.broadcast %114 : vector<1x32xf32> to vector<8x32xf32>
    %116 = arith.addf %113, %115 : vector<8x32xf32>
    %cst_47 = arith.constant 2.000000e+00 : f32
    %117 = vector.broadcast %cst_47 : f32 to vector<8x32xf32>
    %118 = arith.mulf %117, %116 : vector<8x32xf32>
    %c0_48 = arith.constant 0 : index
    %c0_49 = arith.constant 0 : index
    %119 = vector.load %arg7[%c0_48, %c0_49] : memref<1x32xf32, #tpu.memory_space<vmem>>, vector<1x32xf32>
    %c0_50 = arith.constant 0 : index
    %c0_51 = arith.constant 0 : index
    %120 = vector.load %arg8[%c0_50, %c0_51] : memref<1x32xf32, #tpu.memory_space<vmem>>, vector<1x32xf32>
    %cst_52 = arith.constant dense<0.000000e+00> : vector<8xf32>
    %121 = vector.multi_reduction <add>, %118, %cst_52 [1] : vector<8x32xf32> to vector<8xf32>
    %122 = vector.shape_cast %121 : vector<8xf32> to vector<8x1xf32>
    %cst_53 = arith.constant 3.200000e+01 : f32
    %123 = vector.broadcast %cst_53 : f32 to vector<8x1xf32>
    %124 = arith.divf %122, %123 : vector<8x1xf32>
    %125 = vector.broadcast %124 : vector<8x1xf32> to vector<8x32xf32>
    %126 = arith.subf %118, %125 : vector<8x32xf32>
    %127 = arith.mulf %126, %126 : vector<8x32xf32>
    %cst_54 = arith.constant dense<0.000000e+00> : vector<8xf32>
    %128 = vector.multi_reduction <add>, %127, %cst_54 [1] : vector<8x32xf32> to vector<8xf32>
    %129 = vector.shape_cast %128 : vector<8xf32> to vector<8x1xf32>
    %cst_55 = arith.constant 3.200000e+01 : f32
    %130 = vector.broadcast %cst_55 : f32 to vector<8x1xf32>
    %131 = arith.divf %129, %130 : vector<8x1xf32>
    %cst_56 = arith.constant 9.99999974E-6 : f32
    %132 = vector.broadcast %cst_56 : f32 to vector<8x1xf32>
    %133 = arith.addf %131, %132 : vector<8x1xf32>
    %134 = math.rsqrt %133 : vector<8x1xf32>
    %135 = vector.broadcast %134 : vector<8x1xf32> to vector<8x32xf32>
    %136 = arith.mulf %126, %135 : vector<8x32xf32>
    %137 = vector.broadcast %119 : vector<1x32xf32> to vector<8x32xf32>
    %138 = arith.mulf %136, %137 : vector<8x32xf32>
    %139 = vector.broadcast %120 : vector<1x32xf32> to vector<8x32xf32>
    %140 = arith.addf %138, %139 : vector<8x32xf32>
    %141 = arith.truncf %140 : vector<8x32xf32> to vector<8x32xbf16>
    %cst_57 = arith.constant 0.000000e+00 : f32
    %142 = vector.broadcast %cst_57 : f32 to vector<8x32xf32>
    %c0_58 = arith.constant 0 : index
    %c0_59 = arith.constant 0 : index
    %143 = vector.load %arg9[%c0_58, %c0_59] : memref<32x128xbf16, #tpu.memory_space<vmem>>, vector<32x128xbf16>
    %cst_60 = arith.constant dense<0.000000e+00> : vector<8x128xf32>
    %144 = tpu.matmul %141, %143, %cst_60 {dimension_numbers = #tpu.dot_dimension_numbers<[1], [0], [0], [1], [0, 0, 1, 1], [], []>} : vector<8x32xbf16>, vector<32x128xbf16>, vector<8x128xf32> -> vector<8x128xf32>
    %c0_61 = arith.constant 0 : index
    %c0_62 = arith.constant 0 : index
    %145 = vector.load %arg10[%c0_61, %c0_62] : memref<1x128xf32, #tpu.memory_space<vmem>>, vector<1x128xf32>
    %146 = vector.broadcast %145 : vector<1x128xf32> to vector<8x128xf32>
    %147 = arith.addf %144, %146 : vector<8x128xf32>
    %cst_63 = arith.constant 5.000000e-01 : f32
    %148 = vector.broadcast %cst_63 : f32 to vector<8x128xf32>
    %149 = arith.mulf %148, %147 : vector<8x128xf32>
    %cst_64 = arith.constant 0.707106769 : f32
    %150 = vector.broadcast %cst_64 : f32 to vector<8x128xf32>
    %151 = arith.mulf %147, %150 : vector<8x128xf32>
    %cst_65 = arith.constant 0.000000e+00 : f32
    %152 = vector.broadcast %cst_65 : f32 to vector<8x128xf32>
    %153 = arith.cmpf oge, %151, %152 : vector<8x128xf32>
    %cst_66 = arith.constant 1.000000e+00 : f32
    %cst_67 = arith.constant -1.000000e+00 : f32
    %154 = vector.broadcast %cst_66 : f32 to vector<8x128xf32>
    %155 = vector.broadcast %cst_67 : f32 to vector<8x128xf32>
    %156 = arith.select %153, %154, %155 : vector<8x128xi1>, vector<8x128xf32>
    %157 = math.absf %151 : vector<8x128xf32>
    %cst_68 = arith.constant 0.327591091 : f32
    %158 = vector.broadcast %cst_68 : f32 to vector<8x128xf32>
    %159 = arith.mulf %158, %157 : vector<8x128xf32>
    %cst_69 = arith.constant 1.000000e+00 : f32
    %160 = vector.broadcast %cst_69 : f32 to vector<8x128xf32>
    %161 = arith.addf %160, %159 : vector<8x128xf32>
    %cst_70 = arith.constant 1.000000e+00 : f32
    %162 = vector.broadcast %cst_70 : f32 to vector<8x128xf32>
    %163 = arith.divf %162, %161 : vector<8x128xf32>
    %cst_71 = arith.constant 1.06140542 : f32
    %164 = vector.broadcast %cst_71 : f32 to vector<8x128xf32>
    %165 = arith.mulf %164, %163 : vector<8x128xf32>
    %cst_72 = arith.constant -1.45315206 : f32
    %166 = vector.broadcast %cst_72 : f32 to vector<8x128xf32>
    %167 = arith.addf %165, %166 : vector<8x128xf32>
    %168 = arith.mulf %167, %163 : vector<8x128xf32>
    %cst_73 = arith.constant 1.42141378 : f32
    %169 = vector.broadcast %cst_73 : f32 to vector<8x128xf32>
    %170 = arith.addf %168, %169 : vector<8x128xf32>
    %171 = arith.mulf %170, %163 : vector<8x128xf32>
    %cst_74 = arith.constant -0.284496725 : f32
    %172 = vector.broadcast %cst_74 : f32 to vector<8x128xf32>
    %173 = arith.addf %171, %172 : vector<8x128xf32>
    %174 = arith.mulf %173, %163 : vector<8x128xf32>
    %cst_75 = arith.constant 0.254829586 : f32
    %175 = vector.broadcast %cst_75 : f32 to vector<8x128xf32>
    %176 = arith.addf %174, %175 : vector<8x128xf32>
    %177 = arith.mulf %176, %163 : vector<8x128xf32>
    %cst_76 = arith.constant 0.000000e+00 : f32
    %178 = vector.broadcast %cst_76 : f32 to vector<8x128xf32>
    %179 = arith.subf %178, %157 : vector<8x128xf32>
    %180 = arith.mulf %179, %157 : vector<8x128xf32>
    %181 = math.exp %180 : vector<8x128xf32>
    %182 = arith.mulf %177, %181 : vector<8x128xf32>
    %cst_77 = arith.constant 1.000000e+00 : f32
    %183 = vector.broadcast %cst_77 : f32 to vector<8x128xf32>
    %184 = arith.subf %183, %182 : vector<8x128xf32>
    %185 = arith.mulf %156, %184 : vector<8x128xf32>
    %cst_78 = arith.constant 1.000000e+00 : f32
    %186 = vector.broadcast %cst_78 : f32 to vector<8x128xf32>
    %187 = arith.addf %186, %185 : vector<8x128xf32>
    %188 = arith.mulf %149, %187 : vector<8x128xf32>
    %189 = arith.truncf %188 : vector<8x128xf32> to vector<8x128xbf16>
    %c0_79 = arith.constant 0 : index
    %c0_80 = arith.constant 0 : index
    %190 = vector.load %arg11[%c0_79, %c0_80] : memref<128x32xbf16, #tpu.memory_space<vmem>>, vector<128x32xbf16>
    %cst_81 = arith.constant dense<0.000000e+00> : vector<8x32xf32>
    %191 = tpu.matmul %189, %190, %cst_81 {dimension_numbers = #tpu.dot_dimension_numbers<[1], [0], [0], [1], [0, 0, 1, 1], [], []>} : vector<8x128xbf16>, vector<128x32xbf16>, vector<8x32xf32> -> vector<8x32xf32>
    %192 = arith.addf %142, %191 : vector<8x32xf32>
    %c0_82 = arith.constant 0 : index
    %c0_83 = arith.constant 0 : index
    %193 = vector.load %arg12[%c0_82, %c0_83] : memref<1x32xf32, #tpu.memory_space<vmem>>, vector<1x32xf32>
    %194 = vector.broadcast %193 : vector<1x32xf32> to vector<8x32xf32>
    %195 = arith.addf %192, %194 : vector<8x32xf32>
    %cst_84 = arith.constant 2.000000e+00 : f32
    %196 = vector.broadcast %cst_84 : f32 to vector<8x32xf32>
    %197 = arith.mulf %196, %195 : vector<8x32xf32>
    %198 = vector.shape_cast %197 : vector<8x32xf32> to vector<1x8x32xf32>
    %c0_85 = arith.constant 0 : index
    %c0_86 = arith.constant 0 : index
    %c0_87 = arith.constant 0 : index
    %199 = vector.load %arg13[%c0_85, %c0_86, %c0_87] : memref<1x8x32xf32, #tpu.memory_space<vmem>>, vector<1x8x32xf32>
    tpu.vector_store %arg13[%c0_85, %c0_86, %c0_87], %198 {strides = array<i32>} : memref<1x8x32xf32, #tpu.memory_space<vmem>>, vector<1x8x32xf32>,
    return
  }
  func.func @transform_0(%arg0: i32) -> (i32, i32, i32) {
    %c0_i32 = arith.constant 0 : i32
    %c0_i32_0 = arith.constant 0 : i32
    %c0_i32_1 = arith.constant 0 : i32
    return %arg0, %c0_i32, %c0_i32_0 : i32, i32, i32
  }
  func.func @transform_1(%arg0: i32) -> (i32, i32) {
    %c0_i32 = arith.constant 0 : i32
    %c0_i32_0 = arith.constant 0 : i32
    %c0_i32_1 = arith.constant 0 : i32
    return %c0_i32, %c0_i32_0 : i32, i32
  }
  func.func @transform_2(%arg0: i32) -> (i32, i32) {
    %c0_i32 = arith.constant 0 : i32
    %c0_i32_0 = arith.constant 0 : i32
    %c0_i32_1 = arith.constant 0 : i32
    return %c0_i32, %c0_i32_0 : i32, i32
  }
  func.func @transform_3(%arg0: i32) -> (i32, i32) {
    %c0_i32 = arith.constant 0 : i32
    %c0_i32_0 = arith.constant 0 : i32
    %c0_i32_1 = arith.constant 0 : i32
    return %c0_i32, %c0_i32_0 : i32, i32
  }
  func.func @transform_4(%arg0: i32) -> (i32, i32) {
    %c0_i32 = arith.constant 0 : i32
    %c0_i32_0 = arith.constant 0 : i32
    %c0_i32_1 = arith.constant 0 : i32
    return %c0_i32, %c0_i32_0 : i32, i32
  }
  func.func @transform_5(%arg0: i32) -> (i32, i32) {
    %c0_i32 = arith.constant 0 : i32
    %c0_i32_0 = arith.constant 0 : i32
    %c0_i32_1 = arith.constant 0 : i32
    return %c0_i32, %c0_i32_0 : i32, i32
  }
  func.func @transform_6(%arg0: i32) -> (i32, i32) {
    %c0_i32 = arith.constant 0 : i32
    %c0_i32_0 = arith.constant 0 : i32
    %c0_i32_1 = arith.constant 0 : i32
    return %c0_i32, %c0_i32_0 : i32, i32
  }
  func.func @transform_7(%arg0: i32) -> (i32, i32) {
    %c0_i32 = arith.constant 0 : i32
    %c0_i32_0 = arith.constant 0 : i32
    %c0_i32_1 = arith.constant 0 : i32
    return %c0_i32, %c0_i32_0 : i32, i32
  }
  func.func @transform_8(%arg0: i32) -> (i32, i32) {
    %c0_i32 = arith.constant 0 : i32
    %c0_i32_0 = arith.constant 0 : i32
    %c0_i32_1 = arith.constant 0 : i32
    return %c0_i32, %c0_i32_0 : i32, i32
  }
  func.func @transform_9(%arg0: i32) -> (i32, i32) {
    %c0_i32 = arith.constant 0 : i32
    %c0_i32_0 = arith.constant 0 : i32
    %c0_i32_1 = arith.constant 0 : i32
    return %c0_i32, %c0_i32_0 : i32, i32
  }
  func.func @transform_10(%arg0: i32) -> (i32, i32) {
    %c0_i32 = arith.constant 0 : i32
    %c0_i32_0 = arith.constant 0 : i32
    %c0_i32_1 = arith.constant 0 : i32
    return %c0_i32, %c0_i32_0 : i32, i32
  }
  func.func @transform_11(%arg0: i32) -> (i32, i32) {
    %c0_i32 = arith.constant 0 : i32
    %c0_i32_0 = arith.constant 0 : i32
    %c0_i32_1 = arith.constant 0 : i32
    return %c0_i32, %c0_i32_0 : i32, i32
  }
  func.func @transform_12(%arg0: i32) -> (i32, i32, i32) {
    %c0_i32 = arith.constant 0 : i32
    %c0_i32_0 = arith.constant 0 : i32
    %c0_i32_1 = arith.constant 0 : i32
    return %arg0, %c0_i32, %c0_i32_0 : i32, i32, i32
  }
}

</mosaic_0001>

<llo_original>
// kernel: tpu_custom_call.1
$region0: #{tpu_custom_call.1}
  #allocation0 [shape = 'u32[]', space=smem, size = 0x4, offset = 0x4, fixed_abs, tag = 'smem constant byte address 0x4 - core index']
  #allocation1 [shape = 'u32[72,128]{1,0:T(1,128)}', space=vmem, size = 0x9000, scoped, tag = 'internal scratch']
  #allocation2 [shape = 'bf16[1,8,32]{2,1,0:T(8,128)(2,1)}', space=vmem, size = 0x800, scoped, tag = 'scratch operand']
  %s0 = inlined_call_operand.vmem [shape: f32[2,8,32], index: 0, kind: input, shape index: {}]
  %s1 = inlined_call_operand.vmem [shape: f32[1,32], index: 1, kind: input, shape index: {}]
  %s2 = inlined_call_operand.vmem [shape: f32[1,32], index: 2, kind: input, shape index: {}]
  %s3 = inlined_call_operand.vmem [shape: bf16[32,96], index: 3, kind: input, shape index: {}]
  %s4 = inlined_call_operand.vmem [shape: bf16[32,32], index: 4, kind: input, shape index: {}]
  %s5 = inlined_call_operand.vmem [shape: f32[1,32], index: 5, kind: input, shape index: {}]
  %s6 = inlined_call_operand.vmem [shape: f32[1,32], index: 6, kind: input, shape index: {}]
  %s7 = inlined_call_operand.vmem [shape: f32[1,32], index: 7, kind: input, shape index: {}]
  %s8 = inlined_call_operand.vmem [shape: bf16[32,128], index: 8, kind: input, shape index: {}]
  %s9 = inlined_call_operand.vmem [shape: f32[1,128], index: 9, kind: input, shape index: {}]
  %s10 = inlined_call_operand.vmem [shape: bf16[128,32], index: 10, kind: input, shape index: {}]
  %s11 = inlined_call_operand.vmem [shape: f32[1,32], index: 11, kind: input, shape index: {}]
  %s12 = inlined_call_operand.hbm [shape: f32[2,8,32], index: 12, kind: output, shape index: {}]
  %s13 = sld [smem:[#allocation0]]
  $region81: #{tpu_custom_call.1} parent=0
    _
  %s15 = ssub.s32 1, %s13
  %s16 = scalar_select 0, %s15, %s13
  $region1: #{tpu_custom_call.1} parent=0
    #allocation3 [shape = 'u8[8192]{0}', space=vmem, size = 0x2000, scoped, tag = 'output window, operand 0']
    #allocation4 [shape = 's32[2]{0}', space=sflag, size = 0x8, scoped, tag = 'scoped memory for tpu_custom_call.1']
    %17 = vsyncpa [#allocation4], 0
    %s18 = scalar_lea.sflag [#allocation4], 1
    %19 = vsyncpa %s18, 0
    loop: start=0, step=1, limit=4
    $region2: #{tpu_custom_call.1} parent=1 // loop_pre_header
      _
    $region3: #{tpu_custom_call.1} parent=1 // loop_header
      %s21 = sphi 0, %s25
      %p22 = scmp.ge.s32.totalorder %s21, 4
      %s31 = sphi 0, %s33
      %s34 = sphi 0, %s31
      %s35 = sphi 0, %s34
      %s51 = sphi 0, %s35
      %s55 = sphi 0, %s55
      %s57 = sphi 0, %s55
      %s58 = sphi 0, %s57
      %s72 = sphi 0, %s58
      %s76 = sphi 0, %s76
      %s78 = sphi 0, %s76
      %s79 = sphi 0, %s78
      %s93 = sphi 0, %s79
      %s97 = sphi 0, %s97
      %s99 = sphi 0, %s97
      %s100 = sphi 0, %s99
      %s114 = sphi 0, %s100
      %s118 = sphi 0, %s118
      %s120 = sphi 0, %s118
      %s121 = sphi 0, %s120
      %s135 = sphi 0, %s121
      %s139 = sphi 0, %s139
      %s141 = sphi 0, %s139
      %s142 = sphi 0, %s141
      %s156 = sphi 0, %s142
      %s160 = sphi 0, %s160
      %s162 = sphi 0, %s160
      %s163 = sphi 0, %s162
      %s177 = sphi 0, %s163
      %s181 = sphi 0, %s181
      %s183 = sphi 0, %s181
      %s184 = sphi 0, %s183
      %s198 = sphi 0, %s184
      %s202 = sphi 0, %s202
      %s204 = sphi 0, %s202
      %s205 = sphi 0, %s204
      %s219 = sphi 0, %s205
      %s223 = sphi 0, %s223
      %s225 = sphi 0, %s223
      %s226 = sphi 0, %s225
      %s240 = sphi 0, %s226
      %s244 = sphi 0, %s244
      %s246 = sphi 0, %s244
      %s247 = sphi 0, %s246
      %s261 = sphi 0, %s247
      %s265 = sphi 0, %s265
      %s267 = sphi 0, %s265
      %s268 = sphi 0, %s267
      %s282 = sphi 0, %s268
      %s288 = sphi 0, %s290
      %s291 = sphi 0, %s288
      %s292 = sphi 0, %s291
      %s308 = sphi 0, %s292
    $region4: #{tpu_custom_call.1} parent=1 // loop_header_branch
      %24 = sbr.rel (%p22) target = $region8
    $region5: #{tpu_custom_call.1} parent=1 // loop_body
      %s26 = ssub.s32 %s21, 1
      %s27 = ssub.s32 %s21, 2
      %s28 = sadd.s32 %s21, 1
      %s29 = ssub.s32 %s21, %s28
      %p30 = scmp.eq.s32.totalorder %s29, 0
      %s32 = sadd.s32 %s31, 1
      %s33 = scalar_select %p30, %s31, %s32
      %p36 = pneg %p30
      %p37 = scmp.eq.s32.totalorder %s21, 1
      %p38 = por %p36, %p37
      %p39 = scmp.ne.s32.totalorder %s31, %s34
      %p40 = scmp.eq.s32.totalorder %s21, 0
      %p41 = por %p39, %p40
      %p42 = scmp.ne.s32.totalorder %s31, %s34
      %p43 = scmp.eq.s32.totalorder %s26, 1
      %p44 = por %p42, %p43
      %p45 = scmp.ne.s32.totalorder %s34, %s35
      %p46 = scmp.eq.s32.totalorder %s26, 0
      %p47 = por %p45, %p46
      %p48 = scmp.ne.s32.totalorder %s34, %s35
      %p49 = scmp.eq.s32.totalorder %s27, 1
      %p50 = por %p48, %p49
      %p52 = scmp.ne.s32.totalorder %s35, %s51
      %p53 = scmp.eq.s32.totalorder %s27, 0
      %p54 = por %p52, %p53
      %s56 = sadd.s32 %s55, 1
      %p59 = scmp.eq.s32.totalorder %s21, 1
      %p60 = scmp.ne.s32.totalorder %s55, %s57
      %p61 = scmp.eq.s32.totalorder %s21, 0
      %p62 = por %p60, %p61
      %p63 = scmp.ne.s32.totalorder %s55, %s57
      %p64 = scmp.eq.s32.totalorder %s26, 1
      %p65 = por %p63, %p64
      %p66 = scmp.ne.s32.totalorder %s57, %s58
      %p67 = scmp.eq.s32.totalorder %s26, 0
      %p68 = por %p66, %p67
      %p69 = scmp.ne.s32.totalorder %s57, %s58
      %p70 = scmp.eq.s32.totalorder %s27, 1
      %p71 = por %p69, %p70
      %p73 = scmp.ne.s32.totalorder %s58, %s72
      %p74 = scmp.eq.s32.totalorder %s27, 0
      %p75 = por %p73, %p74
      %s77 = sadd.s32 %s76, 1
      %p80 = scmp.eq.s32.totalorder %s21, 1
      %p81 = scmp.ne.s32.totalorder %s76, %s78
      %p82 = scmp.eq.s32.totalorder %s21, 0
      %p83 = por %p81, %p82
      %p84 = scmp.ne.s32.totalorder %s76, %s78
      %p85 = scmp.eq.s32.totalorder %s26, 1
      %p86 = por %p84, %p85
      %p87 = scmp.ne.s32.totalorder %s78, %s79
      %p88 = scmp.eq.s32.totalorder %s26, 0
      %p89 = por %p87, %p88
      %p90 = scmp.ne.s32.totalorder %s78, %s79
      %p91 = scmp.eq.s32.totalorder %s27, 1
      %p92 = por %p90, %p91
      %p94 = scmp.ne.s32.totalorder %s79, %s93
      %p95 = scmp.eq.s32.totalorder %s27, 0
      %p96 = por %p94, %p95
      %s98 = sadd.s32 %s97, 1
      %p101 = scmp.eq.s32.totalorder %s21, 1
      %p102 = scmp.ne.s32.totalorder %s97, %s99
      %p103 = scmp.eq.s32.totalorder %s21, 0
      %p104 = por %p102, %p103
      %p105 = scmp.ne.s32.totalorder %s97, %s99
      %p106 = scmp.eq.s32.totalorder %s26, 1
      %p107 = por %p105, %p106
      %p108 = scmp.ne.s32.totalorder %s99, %s100
      %p109 = scmp.eq.s32.totalorder %s26, 0
      %p110 = por %p108, %p109
      %p111 = scmp.ne.s32.totalorder %s99, %s100
      %p112 = scmp.eq.s32.totalorder %s27, 1
      %p113 = por %p111, %p112
      %p115 = scmp.ne.s32.totalorder %s100, %s114
      %p116 = scmp.eq.s32.totalorder %s27, 0
      %p117 = por %p115, %p116
      %s119 = sadd.s32 %s118, 1
      %p122 = scmp.eq.s32.totalorder %s21, 1
      %p123 = scmp.ne.s32.totalorder %s118, %s120
      %p124 = scmp.eq.s32.totalorder %s21, 0
      %p125 = por %p123, %p124
      %p126 = scmp.ne.s32.totalorder %s118, %s120
      %p127 = scmp.eq.s32.totalorder %s26, 1
      %p128 = por %p126, %p127
      %p129 = scmp.ne.s32.totalorder %s120, %s121
      %p130 = scmp.eq.s32.totalorder %s26, 0
      %p131 = por %p129, %p130
      %p132 = scmp.ne.s32.totalorder %s120, %s121
      %p133 = scmp.eq.s32.totalorder %s27, 1
      %p134 = por %p132, %p133
      %p136 = scmp.ne.s32.totalorder %s121, %s135
      %p137 = scmp.eq.s32.totalorder %s27, 0
      %p138 = por %p136, %p137
      %s140 = sadd.s32 %s139, 1
      %p143 = scmp.eq.s32.totalorder %s21, 1
      %p144 = scmp.ne.s32.totalorder %s139, %s141
      %p145 = scmp.eq.s32.totalorder %s21, 0
      %p146 = por %p144, %p145
      %p147 = scmp.ne.s32.totalorder %s139, %s141
      %p148 = scmp.eq.s32.totalorder %s26, 1
      %p149 = por %p147, %p148
      %p150 = scmp.ne.s32.totalorder %s141, %s142
      %p151 = scmp.eq.s32.totalorder %s26, 0
      %p152 = por %p150, %p151
      %p153 = scmp.ne.s32.totalorder %s141, %s142
      %p154 = scmp.eq.s32.totalorder %s27, 1
      %p155 = por %p153, %p154
      %p157 = scmp.ne.s32.totalorder %s142, %s156
      %p158 = scmp.eq.s32.totalorder %s27, 0
      %p159 = por %p157, %p158
      %s161 = sadd.s32 %s160, 1
      %p164 = scmp.eq.s32.totalorder %s21, 1
      %p165 = scmp.ne.s32.totalorder %s160, %s162
      %p166 = scmp.eq.s32.totalorder %s21, 0
      %p167 = por %p165, %p166
      %p168 = scmp.ne.s32.totalorder %s160, %s162
      %p169 = scmp.eq.s32.totalorder %s26, 1
      %p170 = por %p168, %p169
      %p171 = scmp.ne.s32.totalorder %s162, %s163
      %p172 = scmp.eq.s32.totalorder %s26, 0
      %p173 = por %p171, %p172
      %p174 = scmp.ne.s32.totalorder %s162, %s163
      %p175 = scmp.eq.s32.totalorder %s27, 1
      %p176 = por %p174, %p175
      %p178 = scmp.ne.s32.totalorder %s163, %s177
      %p179 = scmp.eq.s32.totalorder %s27, 0
      %p180 = por %p178, %p179
      %s182 = sadd.s32 %s181, 1
      %p185 = scmp.eq.s32.totalorder %s21, 1
      %p186 = scmp.ne.s32.totalorder %s181, %s183
      %p187 = scmp.eq.s32.totalorder %s21, 0
      %p188 = por %p186, %p187
      %p189 = scmp.ne.s32.totalorder %s181, %s183
      %p190 = scmp.eq.s32.totalorder %s26, 1
      %p191 = por %p189, %p190
      %p192 = scmp.ne.s32.totalorder %s183, %s184
      %p193 = scmp.eq.s32.totalorder %s26, 0
      %p194 = por %p192, %p193
      %p195 = scmp.ne.s32.totalorder %s183, %s184
      %p196 = scmp.eq.s32.totalorder %s27, 1
      %p197 = por %p195, %p196
      %p199 = scmp.ne.s32.totalorder %s184, %s198
      %p200 = scmp.eq.s32.totalorder %s27, 0
      %p201 = por %p199, %p200
      %s203 = sadd.s32 %s202, 1
      %p206 = scmp.eq.s32.totalorder %s21, 1
      %p207 = scmp.ne.s32.totalorder %s202, %s204
      %p208 = scmp.eq.s32.totalorder %s21, 0
      %p209 = por %p207, %p208
      %p210 = scmp.ne.s32.totalorder %s202, %s204
      %p211 = scmp.eq.s32.totalorder %s26, 1
      %p212 = por %p210, %p211
      %p213 = scmp.ne.s32.totalorder %s204, %s205
      %p214 = scmp.eq.s32.totalorder %s26, 0
      %p215 = por %p213, %p214
      %p216 = scmp.ne.s32.totalorder %s204, %s205
      %p217 = scmp.eq.s32.totalorder %s27, 1
      %p218 = por %p216, %p217
      %p220 = scmp.ne.s32.totalorder %s205, %s219
      %p221 = scmp.eq.s32.totalorder %s27, 0
      %p222 = por %p220, %p221
      %s224 = sadd.s32 %s223, 1
      %p227 = scmp.eq.s32.totalorder %s21, 1
      %p228 = scmp.ne.s32.totalorder %s223, %s225
      %p229 = scmp.eq.s32.totalorder %s21, 0
      %p230 = por %p228, %p229
      %p231 = scmp.ne.s32.totalorder %s223, %s225
      %p232 = scmp.eq.s32.totalorder %s26, 1
      %p233 = por %p231, %p232
      %p234 = scmp.ne.s32.totalorder %s225, %s226
      %p235 = scmp.eq.s32.totalorder %s26, 0
      %p236 = por %p234, %p235
      %p237 = scmp.ne.s32.totalorder %s225, %s226
      %p238 = scmp.eq.s32.totalorder %s27, 1
      %p239 = por %p237, %p238
      %p241 = scmp.ne.s32.totalorder %s226, %s240
      %p242 = scmp.eq.s32.totalorder %s27, 0
      %p243 = por %p241, %p242
      %s245 = sadd.s32 %s244, 1
      %p248 = scmp.eq.s32.totalorder %s21, 1
      %p249 = scmp.ne.s32.totalorder %s244, %s246
      %p250 = scmp.eq.s32.totalorder %s21, 0
      %p251 = por %p249, %p250
      %p252 = scmp.ne.s32.totalorder %s244, %s246
      %p253 = scmp.eq.s32.totalorder %s26, 1
      %p254 = por %p252, %p253
      %p255 = scmp.ne.s32.totalorder %s246, %s247
      %p256 = scmp.eq.s32.totalorder %s26, 0
      %p257 = por %p255, %p256
      %p258 = scmp.ne.s32.totalorder %s246, %s247
      %p259 = scmp.eq.s32.totalorder %s27, 1
      %p260 = por %p258, %p259
      %p262 = scmp.ne.s32.totalorder %s247, %s261
      %p263 = scmp.eq.s32.totalorder %s27, 0
      %p264 = por %p262, %p263
      %s266 = sadd.s32 %s265, 1
      %p269 = scmp.eq.s32.totalorder %s21, 1
      %p270 = scmp.ne.s32.totalorder %s265, %s267
      %p271 = scmp.eq.s32.totalorder %s21, 0
      %p272 = por %p270, %p271
      %p273 = scmp.ne.s32.totalorder %s265, %s267
      %p274 = scmp.eq.s32.totalorder %s26, 1
      %p275 = por %p273, %p274
      %p276 = scmp.ne.s32.totalorder %s267, %s268
      %p277 = scmp.eq.s32.totalorder %s26, 0
      %p278 = por %p276, %p277
      %p279 = scmp.ne.s32.totalorder %s267, %s268
      %p280 = scmp.eq.s32.totalorder %s27, 1
      %p281 = por %p279, %p280
      %p283 = scmp.ne.s32.totalorder %s268, %s282
      %p284 = scmp.eq.s32.totalorder %s27, 0
      %p285 = por %p283, %p284
      %s286 = ssub.s32 %s21, %s28
      %p287 = scmp.eq.s32.totalorder %s286, 0
      %s289 = sadd.s32 %s288, 1
      %s290 = scalar_select %p287, %s288, %s289
      %p293 = pneg %p287
      %p294 = scmp.eq.s32.totalorder %s21, 1
      %p295 = por %p293, %p294
      %p296 = scmp.ne.s32.totalorder %s288, %s291
      %p297 = scmp.eq.s32.totalorder %s21, 0
      %p298 = por %p296, %p297
      %p299 = scmp.ne.s32.totalorder %s288, %s291
      %p300 = scmp.eq.s32.totalorder %s26, 1
      %p301 = por %p299, %p300
      %p302 = scmp.ne.s32.totalorder %s291, %s292
      %p303 = scmp.eq.s32.totalorder %s26, 0
      %p304 = por %p302, %p303
      %p305 = scmp.ne.s32.totalorder %s291, %s292
      %p306 = scmp.eq.s32.totalorder %s27, 1
      %p307 = por %p305, %p306
      %p309 = scmp.ne.s32.totalorder %s292, %s308
      %p310 = scmp.eq.s32.totalorder %s27, 0
      %p311 = por %p309, %p310
      %p312 = scmp.le.s32.totalorder 1, %s21
      %p313 = scmp.lt.s32.totalorder %s21, 3
      %p314 = pnand %p312, %p313
      %p315 = pneg %p314
      // Predicated region
      $region9: #{tpu_custom_call.1} parent=5 // pred_check
        _
      $region10: #{tpu_custom_call.1} parent=5 // pred_check_branch
        %317 = sbr.rel (%p314) target = $region12
      $region11: #{tpu_custom_call.1} parent=5 // pred_region
        %s318 = ssub.s32 %s21, 1
        // Predicated region
        $region13: #{tpu_custom_call.1} parent=11 // pred_check
          %p319 = pneg %p68
        $region14: #{tpu_custom_call.1} parent=11 // pred_check_branch
          %321 = sbr.rel (%p319) target = $region16
        $region15: #{tpu_custom_call.1} parent=11 // pred_region
          _
        $region16: #{tpu_custom_call.1} parent=11 // pred_fallthru
          _
        // Predicated region
        $region17: #{tpu_custom_call.1} parent=11 // pred_check
          %p322 = pneg %p89
        $region18: #{tpu_custom_call.1} parent=11 // pred_check_branch
          %324 = sbr.rel (%p322) target = $region20
        $region19: #{tpu_custom_call.1} parent=11 // pred_region
          _
        $region20: #{tpu_custom_call.1} parent=11 // pred_fallthru
          _
        // Predicated region
        $region21: #{tpu_custom_call.1} parent=11 // pred_check
          %p325 = pneg %p110
        $region22: #{tpu_custom_call.1} parent=11 // pred_check_branch
          %327 = sbr.rel (%p325) target = $region24
        $region23: #{tpu_custom_call.1} parent=11 // pred_region
          _
        $region24: #{tpu_custom_call.1} parent=11 // pred_fallthru
          _
        // Predicated region
        $region25: #{tpu_custom_call.1} parent=11 // pred_check
          %p328 = pneg %p131
        $region26: #{tpu_custom_call.1} parent=11 // pred_check_branch
          %330 = sbr.rel (%p328) target = $region28
        $region27: #{tpu_custom_call.1} parent=11 // pred_region
          _
        $region28: #{tpu_custom_call.1} parent=11 // pred_fallthru
          _
        // Predicated region
        $region29: #{tpu_custom_call.1} parent=11 // pred_check
          %p331 = pneg %p152
        $region30: #{tpu_custom_call.1} parent=11 // pred_check_branch
          %333 = sbr.rel (%p331) target = $region32
        $region31: #{tpu_custom_call.1} parent=11 // pred_region
          _
        $region32: #{tpu_custom_call.1} parent=11 // pred_fallthru
          _
        // Predicated region
        $region33: #{tpu_custom_call.1} parent=11 // pred_check
          %p334 = pneg %p173
        $region34: #{tpu_custom_call.1} parent=11 // pred_check_branch
          %336 = sbr.rel (%p334) target = $region36
        $region35: #{tpu_custom_call.1} parent=11 // pred_region
          _
        $region36: #{tpu_custom_call.1} parent=11 // pred_fallthru
          _
        // Predicated region
        $region37: #{tpu_custom_call.1} parent=11 // pred_check
          %p337 = pneg %p194
        $region38: #{tpu_custom_call.1} parent=11 // pred_check_branch
          %339 = sbr.rel (%p337) target = $region40
        $region39: #{tpu_custom_call.1} parent=11 // pred_region
          _
        $region40: #{tpu_custom_call.1} parent=11 // pred_fallthru
          _
        // Predicated region
        $region41: #{tpu_custom_call.1} parent=11 // pred_check
          %p340 = pneg %p215
        $region42: #{tpu_custom_call.1} parent=11 // pred_check_branch
          %342 = sbr.rel (%p340) target = $region44
        $region43: #{tpu_custom_call.1} parent=11 // pred_region
          _
        $region44: #{tpu_custom_call.1} parent=11 // pred_fallthru
          _
        // Predicated region
        $region45: #{tpu_custom_call.1} parent=11 // pred_check
          %p343 = pneg %p236
        $region46: #{tpu_custom_call.1} parent=11 // pred_check_branch
          %345 = sbr.rel (%p343) target = $region48
        $region47: #{tpu_custom_call.1} parent=11 // pred_region
          _
        $region48: #{tpu_custom_call.1} parent=11 // pred_fallthru
          _
        // Predicated region
        $region49: #{tpu_custom_call.1} parent=11 // pred_check
          %p346 = pneg %p257
        $region50: #{tpu_custom_call.1} parent=11 // pred_check_branch
          %348 = sbr.rel (%p346) target = $region52
        $region51: #{tpu_custom_call.1} parent=11 // pred_region
          _
        $region52: #{tpu_custom_call.1} parent=11 // pred_fallthru
          _
        // Predicated region
        $region53: #{tpu_custom_call.1} parent=11 // pred_check
          %p349 = pneg %p278
        $region54: #{tpu_custom_call.1} parent=11 // pred_check_branch
          %351 = sbr.rel (%p349) target = $region56
        $region55: #{tpu_custom_call.1} parent=11 // pred_region
          _
        $region56: #{tpu_custom_call.1} parent=11 // pred_fallthru
          _
      $region12: #{tpu_custom_call.1} parent=5 // pred_fallthru
        _
      %p352 = scmp.lt.s32.totalorder %s21, 2
      // Predicated region
      $region57: #{tpu_custom_call.1} parent=5 // pred_check
        %p353 = pneg %p352
      $region58: #{tpu_custom_call.1} parent=5 // pred_check_branch
        %355 = sbr.rel (%p353) target = $region60
      $region59: #{tpu_custom_call.1} parent=5 // pred_region
        // Predicated region
        $region61: #{tpu_custom_call.1} parent=59 // pred_check
          %p356 = pneg %p41
        $region62: #{tpu_custom_call.1} parent=59 // pred_check_branch
          %358 = sbr.rel (%p356) target = $region64
        $region63: #{tpu_custom_call.1} parent=59 // pred_region
          %p359 = scmp.lt.s32.totalorder %s21, 1
          %s360 = scalar_select %p359, %s21, 1
          %s361 = smul.addr %s360, 8
          %s362 = scalar_lea.vmem %s0, %s361
        $region64: #{tpu_custom_call.1} parent=59 // pred_fallthru
          _
      $region60: #{tpu_custom_call.1} parent=5 // pred_fallthru
        _
      %p363 = scmp.le.s32.totalorder 1, %s21
      %p364 = scmp.lt.s32.totalorder %s21, 3
      %p365 = pnand %p363, %p364
      %p366 = pneg %p365
      // Predicated region
      $region65: #{tpu_custom_call.1} parent=5 // pred_check
        _
      $region66: #{tpu_custom_call.1} parent=5 // pred_check_branch
        %368 = sbr.rel (%p365) target = $region68
      $region67: #{tpu_custom_call.1} parent=5 // pred_region
        %s369 = ssub.s32 %s21, 1
        %p370 = scmp.lt.s32.totalorder %s26, 1
        %s371 = scalar_select %p370, %s26, 1
        %s372 = smul.addr %s371, 8
        %s373 = scalar_lea.vmem %s0, %s372
        %p374 = pneg %p47
        %p375 = pneg %p44
        %p376 = pneg %p68
        %p377 = pneg %p65
        %p378 = pneg %p89
        %p379 = pneg %p86
        %p380 = pneg %p110
        %p381 = pneg %p107
        %p382 = pneg %p131
        %p383 = pneg %p128
        %p384 = pneg %p152
        %p385 = pneg %p149
        %p386 = pneg %p173
        %p387 = pneg %p170
        %p388 = pneg %p194
        %p389 = pneg %p191
        %p390 = pneg %p215
        %p391 = pneg %p212
        %p392 = pneg %p236
        %p393 = pneg %p233
        %p394 = pneg %p257
        %p395 = pneg %p254
        %p396 = pneg %p278
        %p397 = pneg %p275
        %p398 = pneg %p304
        %p399 = pneg %p301
        %s400 = sand.u32 %s291, 1
        %s401 = scalar_lea.sflag [#allocation4], %s400
        %s402 = sand.u32 %s291, 1
        %s403 = smul.addr %s402, 8
        %s404 = scalar_lea.vmem [#allocation3], %s403
        %p405 = scmp.lt.s32.totalorder %s26, 1
        %s406 = scalar_select %p405, %s26, 1
        %s407 = smul.addr %s406, 8
        %s408 = scalar_lea.vmem %s0, %s407
        %v410 = vld [vmem:[%s408] sm:$0xff]
        %v411 = vld [vmem:[%s1] sm:$0x1]
        %v412 = vld [vmem:[%s2] sm:$0x1]
        %vm413 = vcmask 261120
        %v414 = vsel %vm413, %v410, 0.0
        %415 = vadd.xlane.f32.xlu0 %v414
        %v416 = vpop.xlane.xlu0 %415
        %v417 = vrcp.pop 32.0
        %v418 = vmul.f32 32.0, %v417
        %v419 = vsub.f32 1.0, %v418
        %v420 = vmul.f32 %v417, %v419
        %v421 = vadd.f32 %v417, %v420
        %vm422 = vweird.f32 %v417
        %v423 = vsel %vm422, %v417, %v421
        %v424 = vmul.f32 %v416, %v423
        %v425 = vsub.f32 %v410, %v424
        %v426 = vmul.f32 %v425, %v425
        %v427 = vsel %vm413, %v426, 0.0
        %428 = vadd.xlane.f32.xlu0 %v427
        %v429 = vpop.xlane.xlu0 %428
        %v430 = vmul.f32 %v429, %v423
        %v431 = vadd.f32 %v430, 1e-05
        %v432 = vrsqrt.pop %v431
        %v433 = vmul.f32 %v432, %v431
        %v434 = vmul.f32 %v433, %v432
        %v435 = vmul.f32 0.5, %v434
        %v436 = vsub.f32 1.5, %v435
        %v437 = vmul.f32 %v432, %v436
        %vm438 = vweird.f32 %v431
        %vm439 = vweird.f32 %v432
        %vm440 = vmor %vm438, %vm439
        %v441 = vsel %vm440, %v432, %v437
        %v442 = vmul.f32 %v425, %v441
        %v444 = vperm.slane %v411, 0
        %v446 = vmul.f32 %v442, %v444
        %v448 = vperm.slane %v412, 0
        %v450 = vadd.f32 %v446, %v448
        %v451 = vpack.c.bf16 %v450, %v450
        %v452 = vld [vmem:[%s3] sm:$0xf]
        %v453 = vld [vmem:[%s3 + $0x4] sm:$0xf]
        %v454 = vld [vmem:[%s3 + $0x8] sm:$0xf]
        %v455 = vld [vmem:[%s3 + $0xc] sm:$0xf]
        %v460 = vunpack.c.l.b16 %v452
        %v461 = vunpack.c.l.b16 %v453
        %v462 = vunpack.c.l.b16 %v454
        %v463 = vunpack.c.l.b16 %v455
        %v464 = vpack.c.b16 %v461, %v460
        %v465 = vpack.c.b16 %v463, %v462
        %v469 = vsel %vm413, %v451, 0
        %471 = vmatpush.bf16.msra.mxu0 0
        %472 = vmatpush.bf16.msra.mxu0 0
        %473 = vmatpush.bf16.msra.mxu0 0
        %474 = vmatpush.bf16.msra.mxu0 0
        %475 = vmatpush.bf16.msra.mxu0 0
        %476 = vmatpush.bf16.msra.mxu0 0
        %477 = vmatpush.bf16.msra.mxu0 %v465
        %478 = vmatpush.bf16.msra.mxu0 %v464
        %479 = vmatmul.bf16.gmra.mxu0 %v469
        %v480 = vpop.f32.mrf.mxu0
        %v481 = vadd.f32 0.0, %v480
        %v482 = vpop.f32.mrf.mxu0
        %483 = vdwg.mxu0
        %v484 = vmul.f32 %v481, 0.35355338
        %v485 = vpack.c.bf16 %v484, %v484
        %v486 = vpack.c.bf16 %v481, %v481
        %v488 = vunpack.c.l.b16 %v486
        %v489 = vpack.c.b16 %v488, %v488
        %490 = vrot.lane.b32.xlu0 %v489, 96
        %v491 = vpop.permute.xlu0 %490
        %vm492 = vcmask 64512
        %v494 = vsel %vm492, %v485, 0
        %v497 = vsel %vm492, %v491, 0
        %499 = vmatpush.bf16.xpose.msra.mxu0 0
        %500 = vmatpush.bf16.xpose.msra.mxu0 0
        %501 = vmatpush.bf16.xpose.msra.mxu0 0
        %502 = vmatpush.bf16.xpose.msra.mxu0 0
        %503 = vmatpush.bf16.xpose.msra.mxu0 0
        %504 = vmatpush.bf16.xpose.msra.mxu0 0
        %505 = vmatpush.bf16.xpose.msra.mxu0 0
        %506 = vmatpush.bf16.xpose.msra.mxu0 %v497
        %507 = vmatmul.bf16.gmra.mxu0 %v494
        %v508 = vpop.f32.mrf.mxu0
        %v509 = vadd.f32 0.0, %v508
        %v510 = vpop.f32.mrf.mxu0
        %511 = vdwg.mxu0
        %v512 = vsel %vm492, %v509, -inf
        %513 = vmax.xlane.f32.xlu0 %v512
        %v514 = vpop.xlane.xlu0 %513
        %v515 = vsub.f32 %v509, %v514
        %v516 = vmul.f32 %v515, 1.442695
        %v517 = vpow.pop %v516
        %v518 = vsel %vm492, %v517, 0.0
        %519 = vadd.xlane.f32.xlu0 %v518
        %v520 = vpop.xlane.xlu0 %519
        %v521 = vrcp.pop %v520
        %v522 = vmul.f32 %v517, %v521
        %v523 = vpack.c.bf16 %v522, %v522
        %524 = vrot.lane.b32.xlu0 %v489, 64
        %v525 = vpop.permute.xlu0 %524
        %v527 = vsel %vm492, %v523, 0
        %vm529 = vcmask 1043456
        %v531 = vsel %vm529, %v525, 0
        %533 = vmatpush.bf16.msra.mxu0 0
        %534 = vmatpush.bf16.msra.mxu0 0
        %535 = vmatpush.bf16.msra.mxu0 0
        %536 = vmatpush.bf16.msra.mxu0 0
        %537 = vmatpush.bf16.msra.mxu0 0
        %538 = vmatpush.bf16.msra.mxu0 0
        %539 = vmatpush.bf16.msra.mxu0 0
        %540 = vmatpush.bf16.msra.mxu0 %v531
        %541 = vmatmul.bf16.gmra.mxu0 %v527
        %v542 = vpop.f32.mrf.mxu0
        %v543 = vadd.f32 0.0, %v542
        %v544 = vpop.f32.mrf.mxu0
        %545 = vdwg.mxu0
        %v546 = vpack.c.bf16 %v543, %v543
        %vm547 = vcmask 60416
        %548 = vst.msk [vmem:[#allocation2] sm:$0xf] %vm547, %v546
        %v550 = vunpack.c.l.b16 %v485
        %v551 = vpack.c.b16 %v550, %v550
        %552 = vrot.lane.b32.xlu0 %v551, 120
        %v553 = vpop.permute.xlu0 %552
        %554 = vrot.lane.b32.xlu0 %v489, 88
        %v555 = vpop.permute.xlu0 %554
        %v557 = vsel %vm492, %v553, 0
        %v560 = vsel %vm492, %v555, 0
        %562 = vmatpush.bf16.xpose.msra.mxu0 0
        %563 = vmatpush.bf16.xpose.msra.mxu0 0
        %564 = vmatpush.bf16.xpose.msra.mxu0 0
        %565 = vmatpush.bf16.xpose.msra.mxu0 0
        %566 = vmatpush.bf16.xpose.msra.mxu0 0
        %567 = vmatpush.bf16.xpose.msra.mxu0 0
        %568 = vmatpush.bf16.xpose.msra.mxu0 0
        %569 = vmatpush.bf16.xpose.msra.mxu0 %v560
        %570 = vmatmul.bf16.gmra.mxu0 %v557
        %v571 = vpop.f32.mrf.mxu0
        %v572 = vadd.f32 0.0, %v571
        %v573 = vpop.f32.mrf.mxu0
        %574 = vdwg.mxu0
        %v575 = vsel %vm492, %v572, -inf
        %576 = vmax.xlane.f32.xlu0 %v575
        %v577 = vpop.xlane.xlu0 %576
        %v578 = vsub.f32 %v572, %v577
        %v579 = vmul.f32 %v578, 1.442695
        %v580 = vpow.pop %v579
        %v581 = vsel %vm492, %v580, 0.0
        %582 = vadd.xlane.f32.xlu0 %v581
        %v583 = vpop.xlane.xlu0 %582
        %v584 = vrcp.pop %v583
        %v585 = vmul.f32 %v580, %v584
        %v586 = vpack.c.bf16 %v585, %v585
        %587 = vrot.lane.b32.xlu0 %v489, 56
        %v588 = vpop.permute.xlu0 %587
        %v590 = vsel %vm492, %v586, 0
        %v593 = vsel %vm529, %v588, 0
        %595 = vmatpush.bf16.msra.mxu0 0
        %596 = vmatpush.bf16.msra.mxu0 0
        %597 = vmatpush.bf16.msra.mxu0 0
        %598 = vmatpush.bf16.msra.mxu0 0
        %599 = vmatpush.bf16.msra.mxu0 0
        %600 = vmatpush.bf16.msra.mxu0 0
        %601 = vmatpush.bf16.msra.mxu0 0
        %602 = vmatpush.bf16.msra.mxu0 %v593
        %603 = vmatmul.bf16.gmra.mxu0 %v590
        %v604 = vpop.f32.mrf.mxu0
        %v605 = vadd.f32 0.0, %v604
        %v606 = vpop.f32.mrf.mxu0
        %607 = vdwg.mxu0
        %v608 = vpack.c.bf16 %v605, %v605
        %610 = vrot.lane.b32.xlu0 %v608, 8
        %v611 = vpop.permute.xlu0 %610
        %vm613 = vcmask 126016
        %614 = vst.msk [vmem:[#allocation2] sm:$0xf] %vm613, %v611
        %615 = vrot.lane.b32.xlu0 %v551, 112
        %v616 = vpop.permute.xlu0 %615
        %617 = vrot.lane.b32.xlu0 %v489, 80
        %v618 = vpop.permute.xlu0 %617
        %v620 = vsel %vm492, %v616, 0
        %v623 = vsel %vm492, %v618, 0
        %625 = vmatpush.bf16.xpose.msra.mxu0 0
        %626 = vmatpush.bf16.xpose.msra.mxu0 0
        %627 = vmatpush.bf16.xpose.msra.mxu0 0
        %628 = vmatpush.bf16.xpose.msra.mxu0 0
        %629 = vmatpush.bf16.xpose.msra.mxu0 0
        %630 = vmatpush.bf16.xpose.msra.mxu0 0
        %631 = vmatpush.bf16.xpose.msra.mxu0 0
        %632 = vmatpush.bf16.xpose.msra.mxu0 %v623
        %633 = vmatmul.bf16.gmra.mxu0 %v620
        %v634 = vpop.f32.mrf.mxu0
        %v635 = vadd.f32 0.0, %v634
        %v636 = vpop.f32.mrf.mxu0
        %637 = vdwg.mxu0
        %v638 = vsel %vm492, %v635, -inf
        %639 = vmax.xlane.f32.xlu0 %v638
        %v640 = vpop.xlane.xlu0 %639
        %v641 = vsub.f32 %v635, %v640
        %v642 = vmul.f32 %v641, 1.442695
        %v643 = vpow.pop %v642
        %v644 = vsel %vm492, %v643, 0.0
        %645 = vadd.xlane.f32.xlu0 %v644
        %v646 = vpop.xlane.xlu0 %645
        %v647 = vrcp.pop %v646
        %v648 = vmul.f32 %v643, %v647
        %v649 = vpack.c.bf16 %v648, %v648
        %650 = vrot.lane.b32.xlu0 %v489, 48
        %v651 = vpop.permute.xlu0 %650
        %v653 = vsel %vm492, %v649, 0
        %v656 = vsel %vm529, %v651, 0
        %658 = vmatpush.bf16.msra.mxu0 0
        %659 = vmatpush.bf16.msra.mxu0 0
        %660 = vmatpush.bf16.msra.mxu0 0
        %661 = vmatpush.bf16.msra.mxu0 0
        %662 = vmatpush.bf16.msra.mxu0 0
        %663 = vmatpush.bf16.msra.mxu0 0
        %664 = vmatpush.bf16.msra.mxu0 0
        %665 = vmatpush.bf16.msra.mxu0 %v656
        %666 = vmatmul.bf16.gmra.mxu0 %v653
        %v667 = vpop.f32.mrf.mxu0
        %v668 = vadd.f32 0.0, %v667
        %v669 = vpop.f32.mrf.mxu0
        %670 = vdwg.mxu0
        %v671 = vpack.c.bf16 %v668, %v668
        %673 = vrot.lane.b32.xlu0 %v671, 16
        %v674 = vpop.permute.xlu0 %673
        %vm676 = vcmask 191616
        %677 = vst.msk [vmem:[#allocation2] sm:$0xf] %vm676, %v674
        %678 = vrot.lane.b32.xlu0 %v551, 104
        %v679 = vpop.permute.xlu0 %678
        %680 = vrot.lane.b32.xlu0 %v489, 72
        %v681 = vpop.permute.xlu0 %680
        %v683 = vsel %vm492, %v679, 0
        %v686 = vsel %vm492, %v681, 0
        %688 = vmatpush.bf16.xpose.msra.mxu0 0
        %689 = vmatpush.bf16.xpose.msra.mxu0 0
        %690 = vmatpush.bf16.xpose.msra.mxu0 0
        %691 = vmatpush.bf16.xpose.msra.mxu0 0
        %692 = vmatpush.bf16.xpose.msra.mxu0 0
        %693 = vmatpush.bf16.xpose.msra.mxu0 0
        %694 = vmatpush.bf16.xpose.msra.mxu0 0
        %695 = vmatpush.bf16.xpose.msra.mxu0 %v686
        %696 = vmatmul.bf16.gmra.mxu0 %v683
        %v697 = vpop.f32.mrf.mxu0
        %v698 = vadd.f32 0.0, %v697
        %v699 = vpop.f32.mrf.mxu0
        %700 = vdwg.mxu0
        %v701 = vsel %vm492, %v698, -inf
        %702 = vmax.xlane.f32.xlu0 %v701
        %v703 = vpop.xlane.xlu0 %702
        %v704 = vsub.f32 %v698, %v703
        %v705 = vmul.f32 %v704, 1.442695
        %v706 = vpow.pop %v705
        %v707 = vsel %vm492, %v706, 0.0
        %708 = vadd.xlane.f32.xlu0 %v707
        %v709 = vpop.xlane.xlu0 %708
        %v710 = vrcp.pop %v709
        %v711 = vmul.f32 %v706, %v710
        %v712 = vpack.c.bf16 %v711, %v711
        %713 = vrot.lane.b32.xlu0 %v489, 40
        %v714 = vpop.permute.xlu0 %713
        %v716 = vsel %vm492, %v712, 0
        %v719 = vsel %vm529, %v714, 0
        %721 = vmatpush.bf16.msra.mxu0 0
        %722 = vmatpush.bf16.msra.mxu0 0
        %723 = vmatpush.bf16.msra.mxu0 0
        %724 = vmatpush.bf16.msra.mxu0 0
        %725 = vmatpush.bf16.msra.mxu0 0
        %726 = vmatpush.bf16.msra.mxu0 0
        %727 = vmatpush.bf16.msra.mxu0 0
        %728 = vmatpush.bf16.msra.mxu0 %v719
        %729 = vmatmul.bf16.gmra.mxu0 %v716
        %v730 = vpop.f32.mrf.mxu0
        %v731 = vadd.f32 0.0, %v730
        %v732 = vpop.f32.mrf.mxu0
        %733 = vdwg.mxu0
        %v734 = vpack.c.bf16 %v731, %v731
        %736 = vrot.lane.b32.xlu0 %v734, 24
        %v737 = vpop.permute.xlu0 %736
        %vm739 = vcmask 257216
        %740 = vst.msk [vmem:[#allocation2] sm:$0xf] %vm739, %v737
        %v741 = vld [vmem:[#allocation2] sm:$0xf]
        %v742 = vld [vmem:[%s4] sm:$0xf]
        %v743 = vld [vmem:[%s4 + $0x4] sm:$0xf]
        %v744 = vld [vmem:[%s4 + $0x8] sm:$0xf]
        %v745 = vld [vmem:[%s4 + $0xc] sm:$0xf]
        %v746 = vld [vmem:[%s5] sm:$0x1]
        %v748 = vperm.slane %v746, 0
        %v754 = vunpack.c.l.b16 %v742
        %v755 = vunpack.c.l.b16 %v743
        %v756 = vunpack.c.l.b16 %v744
        %v757 = vunpack.c.l.b16 %v745
        %v758 = vpack.c.b16 %v755, %v754
        %v759 = vpack.c.b16 %v757, %v756
        %v763 = vsel %vm413, %v741, 0
        %765 = vmatpush.bf16.msra.mxu0 0
        %766 = vmatpush.bf16.msra.mxu0 0
        %767 = vmatpush.bf16.msra.mxu0 0
        %768 = vmatpush.bf16.msra.mxu0 0
        %769 = vmatpush.bf16.msra.mxu0 0
        %770 = vmatpush.bf16.msra.mxu0 0
        %771 = vmatpush.bf16.msra.mxu0 %v759
        %772 = vmatpush.bf16.msra.mxu0 %v758
        %773 = vmatmul.bf16.gmra.mxu0 %v763
        %v774 = vpop.f32.mrf.mxu0
        %v775 = vadd.f32 %v748, %v774
        %v776 = vpop.f32.mrf.mxu0
        %777 = vdwg.mxu0
        %v778 = vmul.f32 %v775, 2.0
        %v779 = vld [vmem:[%s6] sm:$0x1]
        %v780 = vld [vmem:[%s7] sm:$0x1]
        %v781 = vsel %vm413, %v778, 0.0
        %782 = vadd.xlane.f32.xlu0 %v781
        %v783 = vpop.xlane.xlu0 %782
        %v784 = vmul.f32 %v783, %v423
        %v785 = vsub.f32 %v778, %v784
        %v786 = vmul.f32 %v785, %v785
        %v787 = vsel %vm413, %v786, 0.0
        %788 = vadd.xlane.f32.xlu0 %v787
        %v789 = vpop.xlane.xlu0 %788
        %v790 = vmul.f32 %v789, %v423
        %v791 = vadd.f32 %v790, 1e-05
        %v792 = vrsqrt.pop %v791
        %v793 = vmul.f32 %v792, %v791
        %v794 = vmul.f32 %v793, %v792
        %v795 = vmul.f32 0.5, %v794
        %v796 = vsub.f32 1.5, %v795
        %v797 = vmul.f32 %v792, %v796
        %vm798 = vweird.f32 %v791
        %vm799 = vweird.f32 %v792
        %vm800 = vmor %vm798, %vm799
        %v801 = vsel %vm800, %v792, %v797
        %v802 = vmul.f32 %v785, %v801
        %v804 = vperm.slane %v779, 0
        %v806 = vmul.f32 %v802, %v804
        %v808 = vperm.slane %v780, 0
        %v810 = vadd.f32 %v806, %v808
        %v811 = vpack.c.bf16 %v810, %v810
        %v812 = vld [vmem:[%s8] sm:$0xf]
        %v813 = vld [vmem:[%s8 + $0x4] sm:$0xf]
        %v814 = vld [vmem:[%s8 + $0x8] sm:$0xf]
        %v815 = vld [vmem:[%s8 + $0xc] sm:$0xf]
        %v816 = vld [vmem:[%s9] sm:$0x1]
        %v818 = vperm.slane %v816, 0
        %v824 = vunpack.c.l.b16 %v812
        %v825 = vunpack.c.l.b16 %v813
        %v826 = vunpack.c.l.b16 %v814
        %v827 = vunpack.c.l.b16 %v815
        %v828 = vpack.c.b16 %v825, %v824
        %v829 = vpack.c.b16 %v827, %v826
        %v833 = vsel %vm413, %v811, 0
        %835 = vmatpush.bf16.msra.mxu0 0
        %836 = vmatpush.bf16.msra.mxu0 0
        %837 = vmatpush.bf16.msra.mxu0 0
        %838 = vmatpush.bf16.msra.mxu0 0
        %839 = vmatpush.bf16.msra.mxu0 0
        %840 = vmatpush.bf16.msra.mxu0 0
        %841 = vmatpush.bf16.msra.mxu0 %v829
        %842 = vmatpush.bf16.msra.mxu0 %v828
        %843 = vmatmul.bf16.gmra.mxu0 %v833
        %v844 = vpop.f32.mrf.mxu0
        %v845 = vadd.f32 %v818, %v844
        %v846 = vpop.f32.mrf.mxu0
        %847 = vdwg.mxu0
        %v848 = vmul.f32 %v845, 0.5
        %v849 = vmul.f32 %v845, 0.70710677
        %vm850 = vcmp.ge.f32.partialorder %v849, 0.0
        %v851 = vsel %vm850, 1.0, -1.0
        %v852 = vand.u32 2147483647, %v849
        %v853 = vmul.f32 %v852, 0.3275911
        %v854 = vadd.f32 %v853, 1.0
        %v855 = vrcp.pop %v854
        %v856 = vmul.f32 %v854, %v855
        %v857 = vsub.f32 1.0, %v856
        %v858 = vmul.f32 %v855, %v857
        %v859 = vadd.f32 %v855, %v858
        %vm860 = vweird.f32 %v854
        %vm861 = vweird.f32 %v855
        %vm862 = vmor %vm860, %vm861
        %v863 = vsel %vm862, %v855, %v859
        %v864 = vand.u32 2147483647, %v854
        %vm865 = vcmp.eq.f32.partialorder %v864, 8.507059e+37
        %v866 = vand.u32 %v854, 2147483648
        %v867 = vor.u32 1.1754944e-38, %v866
        %v868 = vsel %vm865, %v867, %v863
        %v869 = vmul.f32 1.0, %v868
        %v870 = vmul.f32 %v869, 1.0614054
        %v871 = vadd.f32 %v870, -1.4531521
        %v872 = vmul.f32 %v871, %v869
        %v873 = vadd.f32 %v872, 1.4214138
        %v874 = vmul.f32 %v873, %v869
        %v875 = vadd.f32 %v874, -0.28449672
        %v876 = vmul.f32 %v875, %v869
        %v877 = vadd.f32 %v876, 0.2548296
        %v878 = vmul.f32 %v877, %v869
        %v879 = vsub.f32 0.0, %v852
        %v880 = vmul.f32 %v879, %v852
        %v881 = vmul.f32 %v880, 1.442695
        %v882 = vpow.pop %v881
        %v883 = vmul.f32 %v878, %v882
        %v884 = vsub.f32 1.0, %v883
        %v885 = vmul.f32 %v851, %v884
        %v886 = vadd.f32 %v885, 1.0
        %v887 = vmul.f32 %v848, %v886
        %v888 = vpack.c.bf16 %v887, %v887
        %v889 = vld [vmem:[%s10] sm:$0xf]
        %v890 = vld [vmem:[%s10 + $0x4] sm:$0xf]
        %v891 = vld [vmem:[%s10 + $0x8] sm:$0xf]
        %v892 = vld [vmem:[%s10 + $0xc] sm:$0xf]
        %v893 = vld [vmem:[%s10 + $0x10] sm:$0xf]
        %v894 = vld [vmem:[%s10 + $0x14] sm:$0xf]
        %v895 = vld [vmem:[%s10 + $0x18] sm:$0xf]
        %v896 = vld [vmem:[%s10 + $0x1c] sm:$0xf]
        %v897 = vld [vmem:[%s10 + $0x20] sm:$0xf]
        %v898 = vld [vmem:[%s10 + $0x24] sm:$0xf]
        %v899 = vld [vmem:[%s10 + $0x28] sm:$0xf]
        %v900 = vld [vmem:[%s10 + $0x2c] sm:$0xf]
        %v901 = vld [vmem:[%s10 + $0x30] sm:$0xf]
        %v902 = vld [vmem:[%s10 + $0x34] sm:$0xf]
        %v903 = vld [vmem:[%s10 + $0x38] sm:$0xf]
        %v904 = vld [vmem:[%s10 + $0x3c] sm:$0xf]
        %v905 = vld [vmem:[%s11] sm:$0x1]
        %v907 = vperm.slane %v905, 0
        %v925 = vunpack.c.l.b16 %v889
        %v926 = vunpack.c.l.b16 %v890
        %v927 = vunpack.c.l.b16 %v891
        %v928 = vunpack.c.l.b16 %v892
        %v929 = vunpack.c.l.b16 %v893
        %v930 = vunpack.c.l.b16 %v894
        %v931 = vunpack.c.l.b16 %v895
        %v932 = vunpack.c.l.b16 %v896
        %v933 = vunpack.c.l.b16 %v897
        %v934 = vunpack.c.l.b16 %v898
        %v935 = vunpack.c.l.b16 %v899
        %v936 = vunpack.c.l.b16 %v900
        %v937 = vunpack.c.l.b16 %v901
        %v938 = vunpack.c.l.b16 %v902
        %v939 = vunpack.c.l.b16 %v903
        %v940 = vunpack.c.l.b16 %v904
        %v941 = vpack.c.b16 %v926, %v925
        %v942 = vpack.c.b16 %v928, %v927
        %v943 = vpack.c.b16 %v930, %v929
        %v944 = vpack.c.b16 %v932, %v931
        %v945 = vpack.c.b16 %v934, %v933
        %v946 = vpack.c.b16 %v936, %v935
        %v947 = vpack.c.b16 %v938, %v937
        %v948 = vpack.c.b16 %v940, %v939
        %957 = vmatpush.bf16.msra.mxu0 %v948
        %958 = vmatpush.bf16.msra.mxu0 %v947
        %959 = vmatpush.bf16.msra.mxu0 %v946
        %960 = vmatpush.bf16.msra.mxu0 %v945
        %961 = vmatpush.bf16.msra.mxu0 %v944
        %962 = vmatpush.bf16.msra.mxu0 %v943
        %963 = vmatpush.bf16.msra.mxu0 %v942
        %964 = vmatpush.bf16.msra.mxu0 %v941
        %965 = vmatmul.bf16.gmra.mxu0 %v888
        %v966 = vpop.f32.mrf.mxu0
        %v967 = vadd.f32 %v907, %v966
        %v968 = vpop.f32.mrf.mxu0
        %969 = vdwg.mxu0
        %v970 = vmul.f32 %v967, 2.0
        %971 = vst.msk [vmem:[%s404] sm:$0xff] %vm413, %v970
        %s972 = sand.u32 %s291, 1
        %s973 = scalar_lea.sflag [#allocation4], %s972
        %s974 = sand.u32 %s291, 1
        %s975 = smul.addr %s974, 8
        %s976 = scalar_lea.vmem [#allocation3], %s975
        // Predicated region
        $region69: #{tpu_custom_call.1} parent=67 // pred_check
          %p977 = pneg %p301
        $region70: #{tpu_custom_call.1} parent=67 // pred_check_branch
          %979 = sbr.rel (%p977) target = $region72
        $region71: #{tpu_custom_call.1} parent=67 // pred_region
          %981 = vsyncadd %s973, 0
          %s982 = smul.addr %s26, 8
          %s983 = scalar_lea.hbm %s12, %s982
          %s985 = sshll.u32 %s976, 4
          %s986 = int_to_ptr.vmem [resolvable:$true] %s985
          %s987 = sshll.u32 %s983, 4
          %s988 = int_to_ptr.hbm [resolvable:$true] %s987
          %990 = dma.vmem_to_hbm [thread:$0]  %s986, 128, %s988, %s973
        $region72: #{tpu_custom_call.1} parent=67 // pred_fallthru
          _
      $region68: #{tpu_custom_call.1} parent=5 // pred_fallthru
        _
      %p991 = scmp.le.s32.totalorder 2, %s21
      // Predicated region
      $region73: #{tpu_custom_call.1} parent=5 // pred_check
        %p992 = pneg %p991
      $region74: #{tpu_custom_call.1} parent=5 // pred_check_branch
        %994 = sbr.rel (%p992) target = $region76
      $region75: #{tpu_custom_call.1} parent=5 // pred_region
        %s995 = ssub.s32 %s21, 2
        // Predicated region
        $region77: #{tpu_custom_call.1} parent=75 // pred_check
          %p996 = pneg %p307
        $region78: #{tpu_custom_call.1} parent=75 // pred_check_branch
          %998 = sbr.rel (%p996) target = $region80
        $region79: #{tpu_custom_call.1} parent=75 // pred_region
          %s999 = sand.u32 %s292, 1
          %s1000 = scalar_lea.sflag [#allocation4], %s999
          %s1001 = sand.u32 %s292, 1
          %s1002 = smul.addr %s1001, 8
          %s1003 = scalar_lea.vmem [#allocation3], %s1002
          %1005 = dma.done %s1000, 128
        $region80: #{tpu_custom_call.1} parent=75 // pred_fallthru
          _
      $region76: #{tpu_custom_call.1} parent=5 // pred_fallthru
        _
    $region6: #{tpu_custom_call.1} parent=1 // loop_footer
      %s25 = sadd.s32 1, %s21
    $region7: #{tpu_custom_call.1} parent=1 // loop_footer_branch
      %20 = sbr.rel target = $region3
    $region8: #{tpu_custom_call.1} parent=1 // loop_exit
      _
    %1006 = vsyncpa [#allocation4], 1
    %s1007 = scalar_lea.sflag [#allocation4], 1
    %1008 = vsyncpa %s1007, 1

</llo_original>
